<compile_context>
chip_gen: v7x
topology: tpu7x:2x2x1
jax: 0.10.0
libtpu: 0.0.40
codegen_flags: <defaults>
</compile_context>

<pallas_src>
import jax
import jax.numpy as jnp
from jax.experimental import pallas as pl
from jax.experimental.pallas import tpu as pltpu


def _bpr_kernel(wd_ref, u_ids_ref, i_ids_ref, j_ids_ref, w_ref, h_ref, out_ref):
    wd = wd_ref[0]                                    # weight_decay, f32 scalar (SMEM)

    W = w_ref[...].astype(jnp.float32)                # (user_size, D)
    H = h_ref[...].astype(jnp.float32)                # (item_size, D)

    u_ids = u_ids_ref[...]                            # (TB, 1) int32
    i_ids = i_ids_ref[...]
    j_ids = j_ids_ref[...]
    tb = u_ids.shape[0]

    def gather_rows(table, ids):
        # One-hot mask built on the VPU, row-gather done as an MXU matmul.
        # HIGHEST precision keeps the gathered f32 values exact (multiplying
        # by exact 0/1), so results match a true gather to ~1 ulp.
        rows = table.shape[0]
        onehot = (jax.lax.broadcasted_iota(jnp.int32, (tb, rows), 1)
                  == ids).astype(jnp.float32)          # (TB, rows)
        return jax.lax.dot_general(
            onehot, table,
            dimension_numbers=(((1,), (0,)), ((), ())),
            precision=jax.lax.Precision.HIGHEST,
            preferred_element_type=jnp.float32)        # (TB, D)

    u = gather_rows(W, u_ids)
    it = gather_rows(H, i_ids)
    jt = gather_rows(H, j_ids)

    # x_uij = <u, i> - <u, j> = <u, i - j>
    x_uij = jnp.sum(u * (it - jt), axis=1, keepdims=True)          # (TB, 1)

    # F.logsigmoid(x) == min(x, 0) - log1p(exp(-|x|))   (numerically stable)
    log_prob = jnp.minimum(x_uij, 0.0) - jnp.log1p(jnp.exp(-jnp.abs(x_uij)))

    u_norm = jnp.sqrt(jnp.sum(u * u, axis=1, keepdims=True))
    i_norm = jnp.sqrt(jnp.sum(it * it, axis=1, keepdims=True))
    j_norm = jnp.sqrt(jnp.sum(jt * jt, axis=1, keepdims=True))
    regularization = wd * (u_norm + i_norm + j_norm)

    out_ref[...] = (-log_prob + regularization).astype(out_ref.dtype)


def _round_up(x, m):
    return ((x + m - 1) // m) * m


def bpr_forward(W, H, u_idx, i_idx, j_idx, weight_decay, *, block_b=512):
    """BPR per-sample loss.  Returns float32 array of shape (B,)."""
    B = u_idx.shape[0]
    user_size, d_user = W.shape
    item_size, d_item = H.shape
    assert d_user == d_item, "user/item embedding dims must match"
    D = d_user

    # Batch tile: multiple of 8 sublanes; 128-aligned when multi-tile.
    if B <= block_b:
        TB = _round_up(max(B, 1), 8)
        B_pad = TB
    else:
        TB = _round_up(block_b, 128)
        B_pad = _round_up(B, TB)
    num_tiles = B_pad // TB

    def as_col(idx):
        idx = idx.astype(jnp.int32)
        if B_pad != B:
            idx = jnp.pad(idx, (0, B_pad - B))         # pad with valid row 0
        return idx.reshape(B_pad, 1)

    u_col, i_col, j_col = as_col(u_idx), as_col(i_idx), as_col(j_idx)
    wd = jnp.asarray([weight_decay], dtype=jnp.float32)

    grid_spec = pltpu.PrefetchScalarGridSpec(
        num_scalar_prefetch=1,                         # weight_decay -> SMEM
        grid=(num_tiles,),
        in_specs=[
            pl.BlockSpec((TB, 1), lambda b, wd_ref: (b, 0)),
            pl.BlockSpec((TB, 1), lambda b, wd_ref: (b, 0)),
            pl.BlockSpec((TB, 1), lambda b, wd_ref: (b, 0)),
            # Full tables resident in VMEM; constant block index -> copied once.
            pl.BlockSpec((user_size, D), lambda b, wd_ref: (0, 0)),
            pl.BlockSpec((item_size, D), lambda b, wd_ref: (0, 0)),
        ],
        out_specs=pl.BlockSpec((TB, 1), lambda b, wd_ref: (b, 0)),
    )

    out = pl.pallas_call(
        _bpr_kernel,
        out_shape=jax.ShapeDtypeStruct((B_pad, 1), jnp.float32),
        grid_spec=grid_spec,
        compiler_params=pltpu.CompilerParams(
            dimension_semantics=("parallel",)),        # batch tiles independent
    )(wd, u_col, i_col, j_col, W, H)

    return out.reshape(B_pad)[:B]


def _xavier_normal(key, shape):
    fan_in, fan_out = shape
    std = (2.0 / (fan_in + fan_out)) ** 0.5
    return std * jax.random.normal(key, shape, dtype=jnp.float32)


def _reference(W, H, u_idx, i_idx, j_idx, weight_decay):
    u = W[u_idx, :]
    i = H[i_idx, :]
    j = H[j_idx, :]
    x_ui = jnp.sum(u * i, axis=1)
    x_uj = jnp.sum(u * j, axis=1)
    x = x_ui - x_uj
    log_prob = jnp.minimum(x, 0.0) - jnp.log1p(jnp.exp(-jnp.abs(x)))
    reg = weight_decay * (jnp.linalg.norm(u, axis=1)
                          + jnp.linalg.norm(i, axis=1)
                          + jnp.linalg.norm(j, axis=1))
    return -log_prob + reg


if __name__ == "__main__":
    # Small, deterministic config (stand-in for `args`).
    user_size = 10
    item_size = 12
    emb_dim = 32
    weight_decay = 1e-5
    batch = 8

    key = jax.random.PRNGKey(0)
    kW, kH, ku, ki, kj = jax.random.split(key, 5)

    W = _xavier_normal(kW, (user_size, emb_dim))
    H = _xavier_normal(kH, (item_size, emb_dim))

    u_idx = jax.random.randint(ku, (batch,), 0, user_size, dtype=jnp.int32)
    i_idx = jax.random.randint(ki, (batch,), 0, item_size, dtype=jnp.int32)
    j_idx = jax.random.randint(kj, (batch,), 0, item_size, dtype=jnp.int32)

    out = bpr_forward(W, H, u_idx, i_idx, j_idx, weight_decay)
    jax.block_until_ready(out)
    ref = _reference(W, H, u_idx, i_idx, j_idx, weight_decay)
    assert out.shape == (batch,)
    assert jnp.allclose(out, ref, atol=1e-4, rtol=1e-4), (out, ref)

    # Exercise the multi-tile path (batch tiled across the grid + tail padding).
    batch2 = 300
    ku2, ki2, kj2 = jax.random.split(jax.random.PRNGKey(1), 3)
    u2 = jax.random.randint(ku2, (batch2,), 0, user_size, dtype=jnp.int32)
    i2 = jax.random.randint(ki2, (batch2,), 0, item_size, dtype=jnp.int32)
    j2 = jax.random.randint(kj2, (batch2,), 0, item_size, dtype=jnp.int32)
    out2 = bpr_forward(W, H, u2, i2, j2, weight_decay, block_b=128)
    jax.block_until_ready(out2)
    ref2 = _reference(W, H, u2, i2, j2, weight_decay)
    assert out2.shape == (batch2,)
    assert jnp.allclose(out2, ref2, atol=1e-4, rtol=1e-4), (out2, ref2)

    print("KERNEL_OK")
</pallas_src>

<mosaic_0001>
module attributes {stable_mosaic.version = 11 : i64} {
  func.func @_bpr_kernel(%arg0: i32, %arg1: memref<1xf32, #tpu.memory_space<smem>>, %arg2: memref<8x1xi32, #tpu.memory_space<vmem>>, %arg3: memref<8x1xi32, #tpu.memory_space<vmem>>, %arg4: memref<8x1xi32, #tpu.memory_space<vmem>>, %arg5: memref<10x32xf32, #tpu.memory_space<vmem>>, %arg6: memref<12x32xf32, #tpu.memory_space<vmem>>, %arg7: memref<8x1xf32, #tpu.memory_space<vmem>>) attributes {dimension_semantics = [#tpu.dimension_semantics<parallel>], iteration_bounds = array<i64: 1>, scalar_prefetch = 1 : i64, scratch_operands = 0 : i64, tpu.core_type = #tpu.core_type<tc>, window_params = [{transform_indices = @transform_0, window_bounds = array<i64: 8, 1>}, {transform_indices = @transform_1, window_bounds = array<i64: 8, 1>}, {transform_indices = @transform_2, window_bounds = array<i64: 8, 1>}, {pipeline_mode = #tpu.pipeline_mode<synchronous>, transform_indices = @transform_3, window_bounds = array<i64: 10, 32>}, {pipeline_mode = #tpu.pipeline_mode<synchronous>, transform_indices = @transform_4, window_bounds = array<i64: 12, 32>}, {transform_indices = @transform_5, window_bounds = array<i64: 8, 1>}]} {
    %c0 = arith.constant 0 : index
    %0 = memref.load %arg1[%c0] : memref<1xf32, #tpu.memory_space<smem>>
    %c0_0 = arith.constant 0 : index
    %c0_1 = arith.constant 0 : index
    %1 = vector.load %arg5[%c0_0, %c0_1] : memref<10x32xf32, #tpu.memory_space<vmem>>, vector<10x32xf32>
    %c0_2 = arith.constant 0 : index
    %c0_3 = arith.constant 0 : index
    %2 = vector.load %arg6[%c0_2, %c0_3] : memref<12x32xf32, #tpu.memory_space<vmem>>, vector<12x32xf32>
    %c0_4 = arith.constant 0 : index
    %c0_5 = arith.constant 0 : index
    %3 = vector.load %arg2[%c0_4, %c0_5] : memref<8x1xi32, #tpu.memory_space<vmem>>, vector<8x1xi32>
    %c0_6 = arith.constant 0 : index
    %c0_7 = arith.constant 0 : index
    %4 = vector.load %arg3[%c0_6, %c0_7] : memref<8x1xi32, #tpu.memory_space<vmem>>, vector<8x1xi32>
    %c0_8 = arith.constant 0 : index
    %c0_9 = arith.constant 0 : index
    %5 = vector.load %arg4[%c0_8, %c0_9] : memref<8x1xi32, #tpu.memory_space<vmem>>, vector<8x1xi32>
    %6 = tpu.iota {dimensions = array<i32: 1>} : vector<8x10xi32>
    %7 = vector.broadcast %3 : vector<8x1xi32> to vector<8x10xi32>
    %8 = arith.cmpi eq, %6, %7 : vector<8x10xi32>
    %9 = arith.extui %8 : vector<8x10xi1> to vector<8x10xi32>
    %10 = arith.sitofp %9 : vector<8x10xi32> to vector<8x10xf32>
    %cst = arith.constant dense<0.000000e+00> : vector<8x32xf32>
    %11 = tpu.matmul %10, %1, %cst {dimension_numbers = #tpu.dot_dimension_numbers<[1], [0], [0], [1], [0, 0, 1, 1], [], []>, precision = #tpu.contract_precision<fp32>} : vector<8x10xf32>, vector<10x32xf32>, vector<8x32xf32> -> vector<8x32xf32>
    %12 = tpu.iota {dimensions = array<i32: 1>} : vector<8x12xi32>
    %13 = vector.broadcast %4 : vector<8x1xi32> to vector<8x12xi32>
    %14 = arith.cmpi eq, %12, %13 : vector<8x12xi32>
    %15 = arith.extui %14 : vector<8x12xi1> to vector<8x12xi32>
    %16 = arith.sitofp %15 : vector<8x12xi32> to vector<8x12xf32>
    %cst_10 = arith.constant dense<0.000000e+00> : vector<8x32xf32>
    %17 = tpu.matmul %16, %2, %cst_10 {dimension_numbers = #tpu.dot_dimension_numbers<[1], [0], [0], [1], [0, 0, 1, 1], [], []>, precision = #tpu.contract_precision<fp32>} : vector<8x12xf32>, vector<12x32xf32>, vector<8x32xf32> -> vector<8x32xf32>
    %18 = tpu.iota {dimensions = array<i32: 1>} : vector<8x12xi32>
    %19 = vector.broadcast %5 : vector<8x1xi32> to vector<8x12xi32>
    %20 = arith.cmpi eq, %18, %19 : vector<8x12xi32>
    %21 = arith.extui %20 : vector<8x12xi1> to vector<8x12xi32>
    %22 = arith.sitofp %21 : vector<8x12xi32> to vector<8x12xf32>
    %cst_11 = arith.constant dense<0.000000e+00> : vector<8x32xf32>
    %23 = tpu.matmul %22, %2, %cst_11 {dimension_numbers = #tpu.dot_dimension_numbers<[1], [0], [0], [1], [0, 0, 1, 1], [], []>, precision = #tpu.contract_precision<fp32>} : vector<8x12xf32>, vector<12x32xf32>, vector<8x32xf32> -> vector<8x32xf32>
    %24 = arith.subf %17, %23 : vector<8x32xf32>
    %25 = arith.mulf %11, %24 : vector<8x32xf32>
    %cst_12 = arith.constant dense<0.000000e+00> : vector<8xf32>
    %26 = vector.multi_reduction <add>, %25, %cst_12 [1] : vector<8x32xf32> to vector<8xf32>
    %27 = vector.shape_cast %26 : vector<8xf32> to vector<8x1xf32>
    %cst_13 = arith.constant 0.000000e+00 : f32
    %28 = vector.broadcast %cst_13 : f32 to vector<8x1xf32>
    %29 = arith.minimumf %27, %28 : vector<8x1xf32>
    %30 = math.absf %27 : vector<8x1xf32>
    %cst_14 = arith.constant 0.000000e+00 : f32
    %31 = vector.broadcast %cst_14 : f32 to vector<8x1xf32>
    %32 = arith.subf %31, %30 : vector<8x1xf32>
    %33 = math.exp %32 : vector<8x1xf32>
    %34 = math.log1p %33 : vector<8x1xf32>
    %35 = arith.subf %29, %34 : vector<8x1xf32>
    %36 = arith.mulf %11, %11 : vector<8x32xf32>
    %cst_15 = arith.constant dense<0.000000e+00> : vector<8xf32>
    %37 = vector.multi_reduction <add>, %36, %cst_15 [1] : vector<8x32xf32> to vector<8xf32>
    %38 = vector.shape_cast %37 : vector<8xf32> to vector<8x1xf32>
    %39 = math.sqrt %38 : vector<8x1xf32>
    %40 = arith.mulf %17, %17 : vector<8x32xf32>
    %cst_16 = arith.constant dense<0.000000e+00> : vector<8xf32>
    %41 = vector.multi_reduction <add>, %40, %cst_16 [1] : vector<8x32xf32> to vector<8xf32>
    %42 = vector.shape_cast %41 : vector<8xf32> to vector<8x1xf32>
    %43 = math.sqrt %42 : vector<8x1xf32>
    %44 = arith.mulf %23, %23 : vector<8x32xf32>
    %cst_17 = arith.constant dense<0.000000e+00> : vector<8xf32>
    %45 = vector.multi_reduction <add>, %44, %cst_17 [1] : vector<8x32xf32> to vector<8xf32>
    %46 = vector.shape_cast %45 : vector<8xf32> to vector<8x1xf32>
    %47 = math.sqrt %46 : vector<8x1xf32>
    %48 = arith.addf %39, %43 : vector<8x1xf32>
    %49 = arith.addf %48, %47 : vector<8x1xf32>
    %50 = vector.broadcast %0 : f32 to vector<8x1xf32>
    %51 = arith.mulf %50, %49 : vector<8x1xf32>
    %cst_18 = arith.constant 0.000000e+00 : f32
    %52 = vector.broadcast %cst_18 : f32 to vector<8x1xf32>
    %53 = arith.subf %52, %35 : vector<8x1xf32>
    %54 = arith.addf %53, %51 : vector<8x1xf32>
    %c0_19 = arith.constant 0 : index
    %c0_20 = arith.constant 0 : index
    %55 = vector.load %arg7[%c0_19, %c0_20] : memref<8x1xf32, #tpu.memory_space<vmem>>, vector<8x1xf32>
    tpu.vector_store %arg7[%c0_19, %c0_20], %54 {strides = array<i32>} : memref<8x1xf32, #tpu.memory_space<vmem>>, vector<8x1xf32>,
    return
  }
  func.func @transform_0(%arg0: i32, %arg1: memref<1xf32, #tpu.memory_space<smem>>) -> (i32, i32) {
    %c0_i32 = arith.constant 0 : i32
    %c0_i32_0 = arith.constant 0 : i32
    return %arg0, %c0_i32 : i32, i32
  }
  func.func @transform_1(%arg0: i32, %arg1: memref<1xf32, #tpu.memory_space<smem>>) -> (i32, i32) {
    %c0_i32 = arith.constant 0 : i32
    %c0_i32_0 = arith.constant 0 : i32
    return %arg0, %c0_i32 : i32, i32
  }
  func.func @transform_2(%arg0: i32, %arg1: memref<1xf32, #tpu.memory_space<smem>>) -> (i32, i32) {
    %c0_i32 = arith.constant 0 : i32
    %c0_i32_0 = arith.constant 0 : i32
    return %arg0, %c0_i32 : i32, i32
  }
  func.func @transform_3(%arg0: i32, %arg1: memref<1xf32, #tpu.memory_space<smem>>) -> (i32, i32) {
    %c0_i32 = arith.constant 0 : i32
    %c0_i32_0 = arith.constant 0 : i32
    %c0_i32_1 = arith.constant 0 : i32
    return %c0_i32, %c0_i32_0 : i32, i32
  }
  func.func @transform_4(%arg0: i32, %arg1: memref<1xf32, #tpu.memory_space<smem>>) -> (i32, i32) {
    %c0_i32 = arith.constant 0 : i32
    %c0_i32_0 = arith.constant 0 : i32
    %c0_i32_1 = arith.constant 0 : i32
    return %c0_i32, %c0_i32_0 : i32, i32
  }
  func.func @transform_5(%arg0: i32, %arg1: memref<1xf32, #tpu.memory_space<smem>>) -> (i32, i32) {
    %c0_i32 = arith.constant 0 : i32
    %c0_i32_0 = arith.constant 0 : i32
    return %arg0, %c0_i32 : i32, i32
  }
}

</mosaic_0001>

<llo_original>
// kernel: tpu_custom_call.1
$region0: #{tpu_custom_call.1}
  #allocation0 [shape = 'u32[]', space=smem, size = 0x4, offset = 0x4, fixed_abs, tag = 'smem constant byte address 0x4 - core index']
  #allocation1 [shape = 'u32[144,128]{1,0:T(1,128)}', space=vmem, size = 0x12000, scoped, tag = 'internal scratch']
  #allocation2 [shape = 's32[1]{0}', space=sflag, size = 0x4, scoped, tag = 'scoped memory for tpu_custom_call.1']
  #allocation3 [shape = 'f32[1]{0:T(128)S(6)}', space=smem, size = 0x200, scoped, tag = 'prefetched SMEM operand 0']
  %s0 = inlined_call_operand.<no memory space> [shape: f32[1], index: 0, kind: input, shape index: {}]
  %s1 = inlined_call_operand.vmem [shape: s32[8,1], index: 1, kind: input, shape index: {}]
  %s2 = inlined_call_operand.vmem [shape: s32[8,1], index: 2, kind: input, shape index: {}]
  %s3 = inlined_call_operand.vmem [shape: s32[8,1], index: 3, kind: input, shape index: {}]
  %s4 = inlined_call_operand.vmem [shape: f32[10,32], index: 4, kind: input, shape index: {}]
  %s5 = inlined_call_operand.vmem [shape: f32[12,32], index: 5, kind: input, shape index: {}]
  %s6 = inlined_call_operand.vmem [shape: f32[8,1], index: 6, kind: output, shape index: {}]
  %s7 = sld [smem:[#allocation0]]
  $region30: #{tpu_custom_call.1} parent=0
    _
  %s9 = ssub.s32 1, %s7
  %s10 = scalar_select 0, %s9, %s7
  %11 = sst [smem:[#allocation3]] %s0
  // Predicated region
  $region2: #{tpu_custom_call.1} parent=0 // pred_check
    _
  $region3: #{tpu_custom_call.1} parent=0 // pred_check_branch
    %13 = sbr.rel (0) target = $region5
  $region4: #{tpu_custom_call.1} parent=0 // pred_region
    _
  $region5: #{tpu_custom_call.1} parent=0 // pred_fallthru
    _
  // Predicated region
  $region6: #{tpu_custom_call.1} parent=0 // pred_check
    _
  $region7: #{tpu_custom_call.1} parent=0 // pred_check_branch
    %15 = sbr.rel (0) target = $region9
  $region8: #{tpu_custom_call.1} parent=0 // pred_region
    _
  $region9: #{tpu_custom_call.1} parent=0 // pred_fallthru
    _
  // Predicated region
  $region10: #{tpu_custom_call.1} parent=0 // pred_check
    _
  $region11: #{tpu_custom_call.1} parent=0 // pred_check_branch
    %17 = sbr.rel (0) target = $region13
  $region12: #{tpu_custom_call.1} parent=0 // pred_region
    _
  $region13: #{tpu_custom_call.1} parent=0 // pred_fallthru
    _
  // Predicated region
  $region14: #{tpu_custom_call.1} parent=0 // pred_check
    _
  $region15: #{tpu_custom_call.1} parent=0 // pred_check_branch
    %19 = sbr.rel (0) target = $region17
  $region16: #{tpu_custom_call.1} parent=0 // pred_region
    _
  $region17: #{tpu_custom_call.1} parent=0 // pred_fallthru
    _
  // Predicated region
  $region18: #{tpu_custom_call.1} parent=0 // pred_check
    _
  $region19: #{tpu_custom_call.1} parent=0 // pred_check_branch
    %21 = sbr.rel (0) target = $region21
  $region20: #{tpu_custom_call.1} parent=0 // pred_region
    _
  $region21: #{tpu_custom_call.1} parent=0 // pred_fallthru
    _
  %s22 = sld [smem:[#allocation3]]
  %v23 = vld [vmem:[%s4] sm:$0xff]
  %v24 = vld [vmem:[%s4 + $0x8] sm:$0x3]
  %v25 = vld [vmem:[%s5] sm:$0xff]
  %v26 = vld [vmem:[%s5 + $0x8] sm:$0xf]
  %v27 = vld [vmem:[%s1] sm:$0xff]
  %v28 = vld [vmem:[%s2] sm:$0xff]
  %v29 = vld [vmem:[%s3] sm:$0xff]
  %v30 = vlaneseq
  %v31 = vand.u32 %v30, 127
  %32 = vset.pattern.permute.xlu0 0
  %33 = vperm.xlu0 %32, %v27
  %v34 = vpop.permute.xlu0 %33
  %vm35 = vcmp.eq.s32.totalorder %v31, %v34
  %v36 = vsel %vm35, 1, 0
  %v37 = vcvt.s32.f32 %v36
  %vm38 = vcmask 80896
  %v40 = vsel %vm38, %v37, 0
  %vm42 = vcmask 1041408
  %v44 = vsel %vm42, %v24, 0
  %46 = vmatprep.subr.mxu0 0.0
  %v47 = vand.u32 %v23, 4294901760
  %48 = vmatpush1.msra.mxu0 %v47
  %49 = vmatprep.subr.mxu0 0.0
  %v50 = vand.u32 %v44, 4294901760
  %51 = vmatpush1.msra.mxu0 %v50
  %52 = vmatprep.subr.mxu0 0.0
  %53 = vmatpush1.msra.mxu0 0.0
  %54 = vmatprep.subr.mxu0 0.0
  %55 = vmatpush1.msra.mxu0 0.0
  %56 = vmatprep.subr.mxu0 0.0
  %57 = vmatpush1.msra.mxu0 0.0
  %58 = vmatprep.subr.mxu0 0.0
  %59 = vmatpush1.msra.mxu0 0.0
  %60 = vmatprep.subr.mxu0 0.0
  %61 = vmatpush1.msra.mxu0 0.0
  %62 = vmatprep.subr.mxu0 0.0
  %63 = vmatpush1.msra.mxu0 0.0
  %64 = vmatprep.subr.mxu0 0.0
  %65 = vmatpush1.msra.mxu0 0.0
  %66 = vmatprep.subr.mxu0 0.0
  %67 = vmatpush1.msra.mxu0 0.0
  %68 = vmatprep.subr.mxu0 0.0
  %69 = vmatpush1.msra.mxu0 0.0
  %70 = vmatprep.subr.mxu0 0.0
  %71 = vmatpush1.msra.mxu0 0.0
  %72 = vmatprep.subr.mxu0 0.0
  %73 = vmatpush1.msra.mxu0 0.0
  %74 = vmatprep.subr.mxu0 0.0
  %75 = vmatpush1.msra.mxu0 0.0
  %76 = vmatprep.subr.mxu0 0.0
  %77 = vmatpush1.msra.mxu0 0.0
  %78 = vmatprep.subr.mxu0 0.0
  %79 = vmatpush1.msra.mxu0 0.0
  %80 = vmatprep.subr.mxu0 0.0
  %81 = vmatpush1.msra.mxu0 0.0
  %82 = vmatprep.subr.mxu0 0.0
  %83 = vmatpush1.msra.mxu0 0.0
  %84 = vmatprep.subr.mxu0 0.0
  %85 = vmatpush1.msra.mxu0 0.0
  %86 = vmatprep.subr.mxu0 0.0
  %87 = vmatpush1.msra.mxu0 0.0
  %88 = vmatprep.subr.mxu0 0.0
  %89 = vmatpush1.msra.mxu0 0.0
  %90 = vmatprep.subr.mxu0 0.0
  %91 = vmatpush1.msra.mxu0 0.0
  %92 = vmatprep.subr.mxu0 0.0
  %93 = vmatpush1.msra.mxu0 0.0
  %94 = vmatprep.subr.mxu0 0.0
  %95 = vmatpush1.msra.mxu0 0.0
  %96 = vmatprep.subr.mxu0 0.0
  %97 = vmatpush1.msra.mxu0 0.0
  %98 = vmatprep.subr.mxu0 0.0
  %99 = vmatpush1.msra.mxu0 0.0
  %100 = vmatprep.subr.mxu0 0.0
  %101 = vmatpush1.msra.mxu0 0.0
  %102 = vmatprep.subr.mxu0 0.0
  %103 = vmatpush1.msra.mxu0 0.0
  %104 = vmatprep.subr.mxu0 0.0
  %105 = vmatpush1.msra.mxu0 0.0
  %106 = vmatprep.subr.mxu0 0.0
  %107 = vmatpush1.msra.mxu0 0.0
  %108 = vmatprep.subr.mxu0 0.0
  %109 = vmatpush1.msra.mxu0 0.0
  %110 = vmatprep.subr.mxu0 0.0
  %111 = vmatpush1.msra.mxu0 0.0
  %112 = vmatprep.mubr.f32.mxu0 0.0
  %v113 = vand.u32 %v40, 4294901760
  %v114 = vsub.f32 %v40, %v113
  %v115 = vand.u32 %v114, 4294901760
  %v116 = vsub.f32 %v114, %v115
  %v117 = vand.u32 %v116, 4294901760
  %118 = vmatmul.mubr.f32.gmra.mrb[0].mxu0 %v117
  %v119 = vpop.f32.mrb[0].mxu0
  %v120 = vadd.f32 0.0, %v119
  %v121 = vpop.f32.mrb[0].mxu0
  %122 = vdwg.mxu0
  %123 = vmatprep.subr.mxu0 0.0
  %v124 = vand.u32 %v23, 4294901760
  %v125 = vsub.f32 %v23, %v124
  %v126 = vand.u32 %v125, 4294901760
  %v127 = vsub.f32 %v125, %v126
  %v128 = vand.u32 %v127, 4294901760
  %129 = vmatpush1.msra.mxu0 %v128
  %130 = vmatprep.subr.mxu0 0.0
  %v131 = vand.u32 %v44, 4294901760
  %v132 = vsub.f32 %v44, %v131
  %v133 = vand.u32 %v132, 4294901760
  %v134 = vsub.f32 %v132, %v133
  %v135 = vand.u32 %v134, 4294901760
  %136 = vmatpush1.msra.mxu0 %v135
  %137 = vmatprep.subr.mxu0 0.0
  %138 = vmatpush1.msra.mxu0 0.0
  %139 = vmatprep.subr.mxu0 0.0
  %140 = vmatpush1.msra.mxu0 0.0
  %141 = vmatprep.subr.mxu0 0.0
  %142 = vmatpush1.msra.mxu0 0.0
  %143 = vmatprep.subr.mxu0 0.0
  %144 = vmatpush1.msra.mxu0 0.0
  %145 = vmatprep.subr.mxu0 0.0
  %146 = vmatpush1.msra.mxu0 0.0
  %147 = vmatprep.subr.mxu0 0.0
  %148 = vmatpush1.msra.mxu0 0.0
  %149 = vmatprep.subr.mxu0 0.0
  %150 = vmatpush1.msra.mxu0 0.0
  %151 = vmatprep.subr.mxu0 0.0
  %152 = vmatpush1.msra.mxu0 0.0
  %153 = vmatprep.subr.mxu0 0.0
  %154 = vmatpush1.msra.mxu0 0.0
  %155 = vmatprep.subr.mxu0 0.0
  %156 = vmatpush1.msra.mxu0 0.0
  %157 = vmatprep.subr.mxu0 0.0
  %158 = vmatpush1.msra.mxu0 0.0
  %159 = vmatprep.subr.mxu0 0.0
  %160 = vmatpush1.msra.mxu0 0.0
  %161 = vmatprep.subr.mxu0 0.0
  %162 = vmatpush1.msra.mxu0 0.0
  %163 = vmatprep.subr.mxu0 0.0
  %164 = vmatpush1.msra.mxu0 0.0
  %165 = vmatprep.subr.mxu0 0.0
  %166 = vmatpush1.msra.mxu0 0.0
  %167 = vmatprep.subr.mxu0 0.0
  %168 = vmatpush1.msra.mxu0 0.0
  %169 = vmatprep.subr.mxu0 0.0
  %170 = vmatpush1.msra.mxu0 0.0
  %171 = vmatprep.subr.mxu0 0.0
  %172 = vmatpush1.msra.mxu0 0.0
  %173 = vmatprep.subr.mxu0 0.0
  %174 = vmatpush1.msra.mxu0 0.0
  %175 = vmatprep.subr.mxu0 0.0
  %176 = vmatpush1.msra.mxu0 0.0
  %177 = vmatprep.subr.mxu0 0.0
  %178 = vmatpush1.msra.mxu0 0.0
  %179 = vmatprep.subr.mxu0 0.0
  %180 = vmatpush1.msra.mxu0 0.0
  %181 = vmatprep.subr.mxu0 0.0
  %182 = vmatpush1.msra.mxu0 0.0
  %183 = vmatprep.subr.mxu0 0.0
  %184 = vmatpush1.msra.mxu0 0.0
  %185 = vmatprep.subr.mxu0 0.0
  %186 = vmatpush1.msra.mxu0 0.0
  %187 = vmatprep.subr.mxu0 0.0
  %188 = vmatpush1.msra.mxu0 0.0
  %189 = vmatprep.subr.mxu0 0.0
  %190 = vmatpush1.msra.mxu0 0.0
  %191 = vmatprep.subr.mxu0 0.0
  %192 = vmatpush1.msra.mxu0 0.0
  %193 = vmatprep.subr.mxu0 0.0
  %194 = vmatpush1.msra.mxu0 0.0
  %195 = vmatprep.subr.mxu0 0.0
  %196 = vmatpush1.msra.mxu0 0.0
  %197 = vmatprep.mubr.f32.mxu0 0.0
  %v198 = vand.u32 %v40, 4294901760
  %199 = vmatmul.mubr.f32.gmra.mrb[0].mxu0 %v198
  %v200 = vpop.f32.mrb[0].mxu0
  %v201 = vadd.f32 %v120, %v200
  %v202 = vpop.f32.mrb[0].mxu0
  %203 = vdwg.mxu0
  %204 = vmatprep.subr.mxu0 0.0
  %v205 = vand.u32 %v23, 4294901760
  %v206 = vsub.f32 %v23, %v205
  %207 = vmatpush1.msra.mxu0 %v206
  %208 = vmatprep.subr.mxu0 0.0
  %v209 = vand.u32 %v44, 4294901760
  %v210 = vsub.f32 %v44, %v209
  %211 = vmatpush1.msra.mxu0 %v210
  %212 = vmatprep.subr.mxu0 0.0
  %213 = vmatpush1.msra.mxu0 0.0
  %214 = vmatprep.subr.mxu0 0.0
  %215 = vmatpush1.msra.mxu0 0.0
  %216 = vmatprep.subr.mxu0 0.0
  %217 = vmatpush1.msra.mxu0 0.0
  %218 = vmatprep.subr.mxu0 0.0
  %219 = vmatpush1.msra.mxu0 0.0
  %220 = vmatprep.subr.mxu0 0.0
  %221 = vmatpush1.msra.mxu0 0.0
  %222 = vmatprep.subr.mxu0 0.0
  %223 = vmatpush1.msra.mxu0 0.0
  %224 = vmatprep.subr.mxu0 0.0
  %225 = vmatpush1.msra.mxu0 0.0
  %226 = vmatprep.subr.mxu0 0.0
  %227 = vmatpush1.msra.mxu0 0.0
  %228 = vmatprep.subr.mxu0 0.0
  %229 = vmatpush1.msra.mxu0 0.0
  %230 = vmatprep.subr.mxu0 0.0
  %231 = vmatpush1.msra.mxu0 0.0
  %232 = vmatprep.subr.mxu0 0.0
  %233 = vmatpush1.msra.mxu0 0.0
  %234 = vmatprep.subr.mxu0 0.0
  %235 = vmatpush1.msra.mxu0 0.0
  %236 = vmatprep.subr.mxu0 0.0
  %237 = vmatpush1.msra.mxu0 0.0
  %238 = vmatprep.subr.mxu0 0.0
  %239 = vmatpush1.msra.mxu0 0.0
  %240 = vmatprep.subr.mxu0 0.0
  %241 = vmatpush1.msra.mxu0 0.0
  %242 = vmatprep.subr.mxu0 0.0
  %243 = vmatpush1.msra.mxu0 0.0
  %244 = vmatprep.subr.mxu0 0.0
  %245 = vmatpush1.msra.mxu0 0.0
  %246 = vmatprep.subr.mxu0 0.0
  %247 = vmatpush1.msra.mxu0 0.0
  %248 = vmatprep.subr.mxu0 0.0
  %249 = vmatpush1.msra.mxu0 0.0
  %250 = vmatprep.subr.mxu0 0.0
  %251 = vmatpush1.msra.mxu0 0.0
  %252 = vmatprep.subr.mxu0 0.0
  %253 = vmatpush1.msra.mxu0 0.0
  %254 = vmatprep.subr.mxu0 0.0
  %255 = vmatpush1.msra.mxu0 0.0
  %256 = vmatprep.subr.mxu0 0.0
  %257 = vmatpush1.msra.mxu0 0.0
  %258 = vmatprep.subr.mxu0 0.0
  %259 = vmatpush1.msra.mxu0 0.0
  %260 = vmatprep.subr.mxu0 0.0
  %261 = vmatpush1.msra.mxu0 0.0
  %262 = vmatprep.subr.mxu0 0.0
  %263 = vmatpush1.msra.mxu0 0.0
  %264 = vmatprep.subr.mxu0 0.0
  %265 = vmatpush1.msra.mxu0 0.0
  %266 = vmatprep.subr.mxu0 0.0
  %267 = vmatpush1.msra.mxu0 0.0
  %268 = vmatprep.subr.mxu0 0.0
  %269 = vmatpush1.msra.mxu0 0.0
  %270 = vmatprep.subr.mxu0 0.0
  %271 = vmatpush1.msra.mxu0 0.0
  %272 = vmatprep.mubr.f32.mxu0 0.0
  %v273 = vand.u32 %v40, 4294901760
  %v274 = vsub.f32 %v40, %v273
  %275 = vmatmul.mubr.f32.gmra.mrb[0].mxu0 %v274
  %v276 = vpop.f32.mrb[0].mxu0
  %v277 = vadd.f32 %v201, %v276
  %v278 = vpop.f32.mrb[0].mxu0
  %279 = vdwg.mxu0
  %280 = vmatprep.subr.mxu0 0.0
  %v281 = vand.u32 %v23, 4294901760
  %282 = vmatpush1.msra.mxu0 %v281
  %283 = vmatprep.subr.mxu0 0.0
  %v284 = vand.u32 %v44, 4294901760
  %285 = vmatpush1.msra.mxu0 %v284
  %286 = vmatprep.subr.mxu0 0.0
  %287 = vmatpush1.msra.mxu0 0.0
  %288 = vmatprep.subr.mxu0 0.0
  %289 = vmatpush1.msra.mxu0 0.0
  %290 = vmatprep.subr.mxu0 0.0
  %291 = vmatpush1.msra.mxu0 0.0
  %292 = vmatprep.subr.mxu0 0.0
  %293 = vmatpush1.msra.mxu0 0.0
  %294 = vmatprep.subr.mxu0 0.0
  %295 = vmatpush1.msra.mxu0 0.0
  %296 = vmatprep.subr.mxu0 0.0
  %297 = vmatpush1.msra.mxu0 0.0
  %298 = vmatprep.subr.mxu0 0.0
  %299 = vmatpush1.msra.mxu0 0.0
  %300 = vmatprep.subr.mxu0 0.0
  %301 = vmatpush1.msra.mxu0 0.0
  %302 = vmatprep.subr.mxu0 0.0
  %303 = vmatpush1.msra.mxu0 0.0
  %304 = vmatprep.subr.mxu0 0.0
  %305 = vmatpush1.msra.mxu0 0.0
  %306 = vmatprep.subr.mxu0 0.0
  %307 = vmatpush1.msra.mxu0 0.0
  %308 = vmatprep.subr.mxu0 0.0
  %309 = vmatpush1.msra.mxu0 0.0
  %310 = vmatprep.subr.mxu0 0.0
  %311 = vmatpush1.msra.mxu0 0.0
  %312 = vmatprep.subr.mxu0 0.0
  %313 = vmatpush1.msra.mxu0 0.0
  %314 = vmatprep.subr.mxu0 0.0
  %315 = vmatpush1.msra.mxu0 0.0
  %316 = vmatprep.subr.mxu0 0.0
  %317 = vmatpush1.msra.mxu0 0.0
  %318 = vmatprep.subr.mxu0 0.0
  %319 = vmatpush1.msra.mxu0 0.0
  %320 = vmatprep.subr.mxu0 0.0
  %321 = vmatpush1.msra.mxu0 0.0
  %322 = vmatprep.subr.mxu0 0.0
  %323 = vmatpush1.msra.mxu0 0.0
  %324 = vmatprep.subr.mxu0 0.0
  %325 = vmatpush1.msra.mxu0 0.0
  %326 = vmatprep.subr.mxu0 0.0
  %327 = vmatpush1.msra.mxu0 0.0
  %328 = vmatprep.subr.mxu0 0.0
  %329 = vmatpush1.msra.mxu0 0.0
  %330 = vmatprep.subr.mxu0 0.0
  %331 = vmatpush1.msra.mxu0 0.0
  %332 = vmatprep.subr.mxu0 0.0
  %333 = vmatpush1.msra.mxu0 0.0
  %334 = vmatprep.subr.mxu0 0.0
  %335 = vmatpush1.msra.mxu0 0.0
  %336 = vmatprep.subr.mxu0 0.0
  %337 = vmatpush1.msra.mxu0 0.0
  %338 = vmatprep.subr.mxu0 0.0
  %339 = vmatpush1.msra.mxu0 0.0
  %340 = vmatprep.subr.mxu0 0.0
  %341 = vmatpush1.msra.mxu0 0.0
  %342 = vmatprep.subr.mxu0 0.0
  %343 = vmatpush1.msra.mxu0 0.0
  %344 = vmatprep.subr.mxu0 0.0
  %345 = vmatpush1.msra.mxu0 0.0
  %346 = vmatprep.mubr.f32.mxu0 0.0
  %v347 = vand.u32 %v40, 4294901760
  %v348 = vsub.f32 %v40, %v347
  %v349 = vand.u32 %v348, 4294901760
  %350 = vmatmul.mubr.f32.gmra.mrb[0].mxu0 %v349
  %v351 = vpop.f32.mrb[0].mxu0
  %v352 = vadd.f32 %v277, %v351
  %v353 = vpop.f32.mrb[0].mxu0
  %354 = vdwg.mxu0
  %355 = vmatprep.subr.mxu0 0.0
  %v356 = vand.u32 %v23, 4294901760
  %v357 = vsub.f32 %v23, %v356
  %v358 = vand.u32 %v357, 4294901760
  %359 = vmatpush1.msra.mxu0 %v358
  %360 = vmatprep.subr.mxu0 0.0
  %v361 = vand.u32 %v44, 4294901760
  %v362 = vsub.f32 %v44, %v361
  %v363 = vand.u32 %v362, 4294901760
  %364 = vmatpush1.msra.mxu0 %v363
  %365 = vmatprep.subr.mxu0 0.0
  %366 = vmatpush1.msra.mxu0 0.0
  %367 = vmatprep.subr.mxu0 0.0
  %368 = vmatpush1.msra.mxu0 0.0
  %369 = vmatprep.subr.mxu0 0.0
  %370 = vmatpush1.msra.mxu0 0.0
  %371 = vmatprep.subr.mxu0 0.0
  %372 = vmatpush1.msra.mxu0 0.0
  %373 = vmatprep.subr.mxu0 0.0
  %374 = vmatpush1.msra.mxu0 0.0
  %375 = vmatprep.subr.mxu0 0.0
  %376 = vmatpush1.msra.mxu0 0.0
  %377 = vmatprep.subr.mxu0 0.0
  %378 = vmatpush1.msra.mxu0 0.0
  %379 = vmatprep.subr.mxu0 0.0
  %380 = vmatpush1.msra.mxu0 0.0
  %381 = vmatprep.subr.mxu0 0.0
  %382 = vmatpush1.msra.mxu0 0.0
  %383 = vmatprep.subr.mxu0 0.0
  %384 = vmatpush1.msra.mxu0 0.0
  %385 = vmatprep.subr.mxu0 0.0
  %386 = vmatpush1.msra.mxu0 0.0
  %387 = vmatprep.subr.mxu0 0.0
  %388 = vmatpush1.msra.mxu0 0.0
  %389 = vmatprep.subr.mxu0 0.0
  %390 = vmatpush1.msra.mxu0 0.0
  %391 = vmatprep.subr.mxu0 0.0
  %392 = vmatpush1.msra.mxu0 0.0
  %393 = vmatprep.subr.mxu0 0.0
  %394 = vmatpush1.msra.mxu0 0.0
  %395 = vmatprep.subr.mxu0 0.0
  %396 = vmatpush1.msra.mxu0 0.0
  %397 = vmatprep.subr.mxu0 0.0
  %398 = vmatpush1.msra.mxu0 0.0
  %399 = vmatprep.subr.mxu0 0.0
  %400 = vmatpush1.msra.mxu0 0.0
  %401 = vmatprep.subr.mxu0 0.0
  %402 = vmatpush1.msra.mxu0 0.0
  %403 = vmatprep.subr.mxu0 0.0
  %404 = vmatpush1.msra.mxu0 0.0
  %405 = vmatprep.subr.mxu0 0.0
  %406 = vmatpush1.msra.mxu0 0.0
  %407 = vmatprep.subr.mxu0 0.0
  %408 = vmatpush1.msra.mxu0 0.0
  %409 = vmatprep.subr.mxu0 0.0
  %410 = vmatpush1.msra.mxu0 0.0
  %411 = vmatprep.subr.mxu0 0.0
  %412 = vmatpush1.msra.mxu0 0.0
  %413 = vmatprep.subr.mxu0 0.0
  %414 = vmatpush1.msra.mxu0 0.0
  %415 = vmatprep.subr.mxu0 0.0
  %416 = vmatpush1.msra.mxu0 0.0
  %417 = vmatprep.subr.mxu0 0.0
  %418 = vmatpush1.msra.mxu0 0.0
  %419 = vmatprep.subr.mxu0 0.0
  %420 = vmatpush1.msra.mxu0 0.0
  %421 = vmatprep.subr.mxu0 0.0
  %422 = vmatpush1.msra.mxu0 0.0
  %423 = vmatprep.subr.mxu0 0.0
  %424 = vmatpush1.msra.mxu0 0.0
  %425 = vmatprep.mubr.f32.mxu0 0.0
  %v426 = vand.u32 %v40, 4294901760
  %427 = vmatmul.mubr.f32.gmra.mrb[0].mxu0 %v426
  %v428 = vpop.f32.mrb[0].mxu0
  %v429 = vadd.f32 %v352, %v428
  %v430 = vpop.f32.mrb[0].mxu0
  %431 = vdwg.mxu0
  %432 = vmatprep.subr.mxu0 0.0
  %v433 = vand.u32 %v23, 4294901760
  %434 = vmatpush1.msra.mxu0 %v433
  %435 = vmatprep.subr.mxu0 0.0
  %v436 = vand.u32 %v44, 4294901760
  %437 = vmatpush1.msra.mxu0 %v436
  %438 = vmatprep.subr.mxu0 0.0
  %439 = vmatpush1.msra.mxu0 0.0
  %440 = vmatprep.subr.mxu0 0.0
  %441 = vmatpush1.msra.mxu0 0.0
  %442 = vmatprep.subr.mxu0 0.0
  %443 = vmatpush1.msra.mxu0 0.0
  %444 = vmatprep.subr.mxu0 0.0
  %445 = vmatpush1.msra.mxu0 0.0
  %446 = vmatprep.subr.mxu0 0.0
  %447 = vmatpush1.msra.mxu0 0.0
  %448 = vmatprep.subr.mxu0 0.0
  %449 = vmatpush1.msra.mxu0 0.0
  %450 = vmatprep.subr.mxu0 0.0
  %451 = vmatpush1.msra.mxu0 0.0
  %452 = vmatprep.subr.mxu0 0.0
  %453 = vmatpush1.msra.mxu0 0.0
  %454 = vmatprep.subr.mxu0 0.0
  %455 = vmatpush1.msra.mxu0 0.0
  %456 = vmatprep.subr.mxu0 0.0
  %457 = vmatpush1.msra.mxu0 0.0
  %458 = vmatprep.subr.mxu0 0.0
  %459 = vmatpush1.msra.mxu0 0.0
  %460 = vmatprep.subr.mxu0 0.0
  %461 = vmatpush1.msra.mxu0 0.0
  %462 = vmatprep.subr.mxu0 0.0
  %463 = vmatpush1.msra.mxu0 0.0
  %464 = vmatprep.subr.mxu0 0.0
  %465 = vmatpush1.msra.mxu0 0.0
  %466 = vmatprep.subr.mxu0 0.0
  %467 = vmatpush1.msra.mxu0 0.0
  %468 = vmatprep.subr.mxu0 0.0
  %469 = vmatpush1.msra.mxu0 0.0
  %470 = vmatprep.subr.mxu0 0.0
  %471 = vmatpush1.msra.mxu0 0.0
  %472 = vmatprep.subr.mxu0 0.0
  %473 = vmatpush1.msra.mxu0 0.0
  %474 = vmatprep.subr.mxu0 0.0
  %475 = vmatpush1.msra.mxu0 0.0
  %476 = vmatprep.subr.mxu0 0.0
  %477 = vmatpush1.msra.mxu0 0.0
  %478 = vmatprep.subr.mxu0 0.0
  %479 = vmatpush1.msra.mxu0 0.0
  %480 = vmatprep.subr.mxu0 0.0
  %481 = vmatpush1.msra.mxu0 0.0
  %482 = vmatprep.subr.mxu0 0.0
  %483 = vmatpush1.msra.mxu0 0.0
  %484 = vmatprep.subr.mxu0 0.0
  %485 = vmatpush1.msra.mxu0 0.0
  %486 = vmatprep.subr.mxu0 0.0
  %487 = vmatpush1.msra.mxu0 0.0
  %488 = vmatprep.subr.mxu0 0.0
  %489 = vmatpush1.msra.mxu0 0.0
  %490 = vmatprep.subr.mxu0 0.0
  %491 = vmatpush1.msra.mxu0 0.0
  %492 = vmatprep.subr.mxu0 0.0
  %493 = vmatpush1.msra.mxu0 0.0
  %494 = vmatprep.subr.mxu0 0.0
  %495 = vmatpush1.msra.mxu0 0.0
  %496 = vmatprep.subr.mxu0 0.0
  %497 = vmatpush1.msra.mxu0 0.0
  %498 = vmatprep.mubr.f32.mxu0 0.0
  %v499 = vand.u32 %v40, 4294901760
  %500 = vmatmul.mubr.f32.gmra.mrb[0].mxu0 %v499
  %v501 = vpop.f32.mrb[0].mxu0
  %v502 = vadd.f32 %v429, %v501
  %v503 = vpop.f32.mrb[0].mxu0
  %504 = vdwg.mxu0
  %505 = vset.pattern.permute.xlu0 0
  %506 = vperm.xlu0 %505, %v28
  %v507 = vpop.permute.xlu0 %506
  %vm508 = vcmp.eq.s32.totalorder %v31, %v507
  %v509 = vsel %vm508, 1, 0
  %v510 = vcvt.s32.f32 %v509
  %vm511 = vcmask 97280
  %v513 = vsel %vm511, %v510, 0
  %vm515 = vcmask 1043456
  %v517 = vsel %vm515, %v26, 0
  %519 = vmatprep.subr.mxu0 0.0
  %v520 = vand.u32 %v25, 4294901760
  %521 = vmatpush1.msra.mxu0 %v520
  %522 = vmatprep.subr.mxu0 0.0
  %v523 = vand.u32 %v517, 4294901760
  %524 = vmatpush1.msra.mxu0 %v523
  %525 = vmatprep.subr.mxu0 0.0
  %526 = vmatpush1.msra.mxu0 0.0
  %527 = vmatprep.subr.mxu0 0.0
  %528 = vmatpush1.msra.mxu0 0.0
  %529 = vmatprep.subr.mxu0 0.0
  %530 = vmatpush1.msra.mxu0 0.0
  %531 = vmatprep.subr.mxu0 0.0
  %532 = vmatpush1.msra.mxu0 0.0
  %533 = vmatprep.subr.mxu0 0.0
  %534 = vmatpush1.msra.mxu0 0.0
  %535 = vmatprep.subr.mxu0 0.0
  %536 = vmatpush1.msra.mxu0 0.0
  %537 = vmatprep.subr.mxu0 0.0
  %538 = vmatpush1.msra.mxu0 0.0
  %539 = vmatprep.subr.mxu0 0.0
  %540 = vmatpush1.msra.mxu0 0.0
  %541 = vmatprep.subr.mxu0 0.0
  %542 = vmatpush1.msra.mxu0 0.0
  %543 = vmatprep.subr.mxu0 0.0
  %544 = vmatpush1.msra.mxu0 0.0
  %545 = vmatprep.subr.mxu0 0.0
  %546 = vmatpush1.msra.mxu0 0.0
  %547 = vmatprep.subr.mxu0 0.0
  %548 = vmatpush1.msra.mxu0 0.0
  %549 = vmatprep.subr.mxu0 0.0
  %550 = vmatpush1.msra.mxu0 0.0
  %551 = vmatprep.subr.mxu0 0.0
  %552 = vmatpush1.msra.mxu0 0.0
  %553 = vmatprep.subr.mxu0 0.0
  %554 = vmatpush1.msra.mxu0 0.0
  %555 = vmatprep.subr.mxu0 0.0
  %556 = vmatpush1.msra.mxu0 0.0
  %557 = vmatprep.subr.mxu0 0.0
  %558 = vmatpush1.msra.mxu0 0.0
  %559 = vmatprep.subr.mxu0 0.0
  %560 = vmatpush1.msra.mxu0 0.0
  %561 = vmatprep.subr.mxu0 0.0
  %562 = vmatpush1.msra.mxu0 0.0
  %563 = vmatprep.subr.mxu0 0.0
  %564 = vmatpush1.msra.mxu0 0.0
  %565 = vmatprep.subr.mxu0 0.0
  %566 = vmatpush1.msra.mxu0 0.0
  %567 = vmatprep.subr.mxu0 0.0
  %568 = vmatpush1.msra.mxu0 0.0
  %569 = vmatprep.subr.mxu0 0.0
  %570 = vmatpush1.msra.mxu0 0.0
  %571 = vmatprep.subr.mxu0 0.0
  %572 = vmatpush1.msra.mxu0 0.0
  %573 = vmatprep.subr.mxu0 0.0
  %574 = vmatpush1.msra.mxu0 0.0
  %575 = vmatprep.subr.mxu0 0.0
  %576 = vmatpush1.msra.mxu0 0.0
  %577 = vmatprep.subr.mxu0 0.0
  %578 = vmatpush1.msra.mxu0 0.0
  %579 = vmatprep.subr.mxu0 0.0
  %580 = vmatpush1.msra.mxu0 0.0
  %581 = vmatprep.subr.mxu0 0.0
  %582 = vmatpush1.msra.mxu0 0.0
  %583 = vmatprep.subr.mxu0 0.0
  %584 = vmatpush1.msra.mxu0 0.0
  %585 = vmatprep.mubr.f32.mxu0 0.0
  %v586 = vand.u32 %v513, 4294901760
  %v587 = vsub.f32 %v513, %v586
  %v588 = vand.u32 %v587, 4294901760
  %v589 = vsub.f32 %v587, %v588
  %v590 = vand.u32 %v589, 4294901760
  %591 = vmatmul.mubr.f32.gmra.mrb[0].mxu0 %v590
  %v592 = vpop.f32.mrb[0].mxu0
  %v593 = vadd.f32 0.0, %v592
  %v594 = vpop.f32.mrb[0].mxu0
  %595 = vdwg.mxu0
  %596 = vmatprep.subr.mxu0 0.0
  %v597 = vand.u32 %v25, 4294901760
  %v598 = vsub.f32 %v25, %v597
  %v599 = vand.u32 %v598, 4294901760
  %v600 = vsub.f32 %v598, %v599
  %v601 = vand.u32 %v600, 4294901760
  %602 = vmatpush1.msra.mxu0 %v601
  %603 = vmatprep.subr.mxu0 0.0
  %v604 = vand.u32 %v517, 4294901760
  %v605 = vsub.f32 %v517, %v604
  %v606 = vand.u32 %v605, 4294901760
  %v607 = vsub.f32 %v605, %v606
  %v608 = vand.u32 %v607, 4294901760
  %609 = vmatpush1.msra.mxu0 %v608
  %610 = vmatprep.subr.mxu0 0.0
  %611 = vmatpush1.msra.mxu0 0.0
  %612 = vmatprep.subr.mxu0 0.0
  %613 = vmatpush1.msra.mxu0 0.0
  %614 = vmatprep.subr.mxu0 0.0
  %615 = vmatpush1.msra.mxu0 0.0
  %616 = vmatprep.subr.mxu0 0.0
  %617 = vmatpush1.msra.mxu0 0.0
  %618 = vmatprep.subr.mxu0 0.0
  %619 = vmatpush1.msra.mxu0 0.0
  %620 = vmatprep.subr.mxu0 0.0
  %621 = vmatpush1.msra.mxu0 0.0
  %622 = vmatprep.subr.mxu0 0.0
  %623 = vmatpush1.msra.mxu0 0.0
  %624 = vmatprep.subr.mxu0 0.0
  %625 = vmatpush1.msra.mxu0 0.0
  %626 = vmatprep.subr.mxu0 0.0
  %627 = vmatpush1.msra.mxu0 0.0
  %628 = vmatprep.subr.mxu0 0.0
  %629 = vmatpush1.msra.mxu0 0.0
  %630 = vmatprep.subr.mxu0 0.0
  %631 = vmatpush1.msra.mxu0 0.0
  %632 = vmatprep.subr.mxu0 0.0
  %633 = vmatpush1.msra.mxu0 0.0
  %634 = vmatprep.subr.mxu0 0.0
  %635 = vmatpush1.msra.mxu0 0.0
  %636 = vmatprep.subr.mxu0 0.0
  %637 = vmatpush1.msra.mxu0 0.0
  %638 = vmatprep.subr.mxu0 0.0
  %639 = vmatpush1.msra.mxu0 0.0
  %640 = vmatprep.subr.mxu0 0.0
  %641 = vmatpush1.msra.mxu0 0.0
  %642 = vmatprep.subr.mxu0 0.0
  %643 = vmatpush1.msra.mxu0 0.0
  %644 = vmatprep.subr.mxu0 0.0
  %645 = vmatpush1.msra.mxu0 0.0
  %646 = vmatprep.subr.mxu0 0.0
  %647 = vmatpush1.msra.mxu0 0.0
  %648 = vmatprep.subr.mxu0 0.0
  %649 = vmatpush1.msra.mxu0 0.0
  %650 = vmatprep.subr.mxu0 0.0
  %651 = vmatpush1.msra.mxu0 0.0
  %652 = vmatprep.subr.mxu0 0.0
  %653 = vmatpush1.msra.mxu0 0.0
  %654 = vmatprep.subr.mxu0 0.0
  %655 = vmatpush1.msra.mxu0 0.0
  %656 = vmatprep.subr.mxu0 0.0
  %657 = vmatpush1.msra.mxu0 0.0
  %658 = vmatprep.subr.mxu0 0.0
  %659 = vmatpush1.msra.mxu0 0.0
  %660 = vmatprep.subr.mxu0 0.0
  %661 = vmatpush1.msra.mxu0 0.0
  %662 = vmatprep.subr.mxu0 0.0
  %663 = vmatpush1.msra.mxu0 0.0
  %664 = vmatprep.subr.mxu0 0.0
  %665 = vmatpush1.msra.mxu0 0.0
  %666 = vmatprep.subr.mxu0 0.0
  %667 = vmatpush1.msra.mxu0 0.0
  %668 = vmatprep.subr.mxu0 0.0
  %669 = vmatpush1.msra.mxu0 0.0
  %670 = vmatprep.mubr.f32.mxu0 0.0
  %v671 = vand.u32 %v513, 4294901760
  %672 = vmatmul.mubr.f32.gmra.mrb[0].mxu0 %v671
  %v673 = vpop.f32.mrb[0].mxu0
  %v674 = vadd.f32 %v593, %v673
  %v675 = vpop.f32.mrb[0].mxu0
  %676 = vdwg.mxu0
  %677 = vmatprep.subr.mxu0 0.0
  %v678 = vand.u32 %v25, 4294901760
  %v679 = vsub.f32 %v25, %v678
  %680 = vmatpush1.msra.mxu0 %v679
  %681 = vmatprep.subr.mxu0 0.0
  %v682 = vand.u32 %v517, 4294901760
  %v683 = vsub.f32 %v517, %v682
  %684 = vmatpush1.msra.mxu0 %v683
  %685 = vmatprep.subr.mxu0 0.0
  %686 = vmatpush1.msra.mxu0 0.0
  %687 = vmatprep.subr.mxu0 0.0
  %688 = vmatpush1.msra.mxu0 0.0
  %689 = vmatprep.subr.mxu0 0.0
  %690 = vmatpush1.msra.mxu0 0.0
  %691 = vmatprep.subr.mxu0 0.0
  %692 = vmatpush1.msra.mxu0 0.0
  %693 = vmatprep.subr.mxu0 0.0
  %694 = vmatpush1.msra.mxu0 0.0
  %695 = vmatprep.subr.mxu0 0.0
  %696 = vmatpush1.msra.mxu0 0.0
  %697 = vmatprep.subr.mxu0 0.0
  %698 = vmatpush1.msra.mxu0 0.0
  %699 = vmatprep.subr.mxu0 0.0
  %700 = vmatpush1.msra.mxu0 0.0
  %701 = vmatprep.subr.mxu0 0.0
  %702 = vmatpush1.msra.mxu0 0.0
  %703 = vmatprep.subr.mxu0 0.0
  %704 = vmatpush1.msra.mxu0 0.0
  %705 = vmatprep.subr.mxu0 0.0
  %706 = vmatpush1.msra.mxu0 0.0
  %707 = vmatprep.subr.mxu0 0.0
  %708 = vmatpush1.msra.mxu0 0.0
  %709 = vmatprep.subr.mxu0 0.0
  %710 = vmatpush1.msra.mxu0 0.0
  %711 = vmatprep.subr.mxu0 0.0
  %712 = vmatpush1.msra.mxu0 0.0
  %713 = vmatprep.subr.mxu0 0.0
  %714 = vmatpush1.msra.mxu0 0.0
  %715 = vmatprep.subr.mxu0 0.0
  %716 = vmatpush1.msra.mxu0 0.0
  %717 = vmatprep.subr.mxu0 0.0
  %718 = vmatpush1.msra.mxu0 0.0
  %719 = vmatprep.subr.mxu0 0.0
  %720 = vmatpush1.msra.mxu0 0.0
  %721 = vmatprep.subr.mxu0 0.0
  %722 = vmatpush1.msra.mxu0 0.0
  %723 = vmatprep.subr.mxu0 0.0
  %724 = vmatpush1.msra.mxu0 0.0
  %725 = vmatprep.subr.mxu0 0.0
  %726 = vmatpush1.msra.mxu0 0.0
  %727 = vmatprep.subr.mxu0 0.0
  %728 = vmatpush1.msra.mxu0 0.0
  %729 = vmatprep.subr.mxu0 0.0
  %730 = vmatpush1.msra.mxu0 0.0
  %731 = vmatprep.subr.mxu0 0.0
  %732 = vmatpush1.msra.mxu0 0.0
  %733 = vmatprep.subr.mxu0 0.0
  %734 = vmatpush1.msra.mxu0 0.0
  %735 = vmatprep.subr.mxu0 0.0
  %736 = vmatpush1.msra.mxu0 0.0
  %737 = vmatprep.subr.mxu0 0.0
  %738 = vmatpush1.msra.mxu0 0.0
  %739 = vmatprep.subr.mxu0 0.0
  %740 = vmatpush1.msra.mxu0 0.0
  %741 = vmatprep.subr.mxu0 0.0
  %742 = vmatpush1.msra.mxu0 0.0
  %743 = vmatprep.subr.mxu0 0.0
  %744 = vmatpush1.msra.mxu0 0.0
  %745 = vmatprep.mubr.f32.mxu0 0.0
  %v746 = vand.u32 %v513, 4294901760
  %v747 = vsub.f32 %v513, %v746
  %748 = vmatmul.mubr.f32.gmra.mrb[0].mxu0 %v747
  %v749 = vpop.f32.mrb[0].mxu0
  %v750 = vadd.f32 %v674, %v749
  %v751 = vpop.f32.mrb[0].mxu0
  %752 = vdwg.mxu0
  %753 = vmatprep.subr.mxu0 0.0
  %v754 = vand.u32 %v25, 4294901760
  %755 = vmatpush1.msra.mxu0 %v754
  %756 = vmatprep.subr.mxu0 0.0
  %v757 = vand.u32 %v517, 4294901760
  %758 = vmatpush1.msra.mxu0 %v757
  %759 = vmatprep.subr.mxu0 0.0
  %760 = vmatpush1.msra.mxu0 0.0
  %761 = vmatprep.subr.mxu0 0.0
  %762 = vmatpush1.msra.mxu0 0.0
  %763 = vmatprep.subr.mxu0 0.0
  %764 = vmatpush1.msra.mxu0 0.0
  %765 = vmatprep.subr.mxu0 0.0
  %766 = vmatpush1.msra.mxu0 0.0
  %767 = vmatprep.subr.mxu0 0.0
  %768 = vmatpush1.msra.mxu0 0.0
  %769 = vmatprep.subr.mxu0 0.0
  %770 = vmatpush1.msra.mxu0 0.0
  %771 = vmatprep.subr.mxu0 0.0
  %772 = vmatpush1.msra.mxu0 0.0
  %773 = vmatprep.subr.mxu0 0.0
  %774 = vmatpush1.msra.mxu0 0.0
  %775 = vmatprep.subr.mxu0 0.0
  %776 = vmatpush1.msra.mxu0 0.0
  %777 = vmatprep.subr.mxu0 0.0
  %778 = vmatpush1.msra.mxu0 0.0
  %779 = vmatprep.subr.mxu0 0.0
  %780 = vmatpush1.msra.mxu0 0.0
  %781 = vmatprep.subr.mxu0 0.0
  %782 = vmatpush1.msra.mxu0 0.0
  %783 = vmatprep.subr.mxu0 0.0
  %784 = vmatpush1.msra.mxu0 0.0
  %785 = vmatprep.subr.mxu0 0.0
  %786 = vmatpush1.msra.mxu0 0.0
  %787 = vmatprep.subr.mxu0 0.0
  %788 = vmatpush1.msra.mxu0 0.0
  %789 = vmatprep.subr.mxu0 0.0
  %790 = vmatpush1.msra.mxu0 0.0
  %791 = vmatprep.subr.mxu0 0.0
  %792 = vmatpush1.msra.mxu0 0.0
  %793 = vmatprep.subr.mxu0 0.0
  %794 = vmatpush1.msra.mxu0 0.0
  %795 = vmatprep.subr.mxu0 0.0
  %796 = vmatpush1.msra.mxu0 0.0
  %797 = vmatprep.subr.mxu0 0.0
  %798 = vmatpush1.msra.mxu0 0.0
  %799 = vmatprep.subr.mxu0 0.0
  %800 = vmatpush1.msra.mxu0 0.0
  %801 = vmatprep.subr.mxu0 0.0
  %802 = vmatpush1.msra.mxu0 0.0
  %803 = vmatprep.subr.mxu0 0.0
  %804 = vmatpush1.msra.mxu0 0.0
  %805 = vmatprep.subr.mxu0 0.0
  %806 = vmatpush1.msra.mxu0 0.0
  %807 = vmatprep.subr.mxu0 0.0
  %808 = vmatpush1.msra.mxu0 0.0
  %809 = vmatprep.subr.mxu0 0.0
  %810 = vmatpush1.msra.mxu0 0.0
  %811 = vmatprep.subr.mxu0 0.0
  %812 = vmatpush1.msra.mxu0 0.0
  %813 = vmatprep.subr.mxu0 0.0
  %814 = vmatpush1.msra.mxu0 0.0
  %815 = vmatprep.subr.mxu0 0.0
  %816 = vmatpush1.msra.mxu0 0.0
  %817 = vmatprep.subr.mxu0 0.0
  %818 = vmatpush1.msra.mxu0 0.0
  %819 = vmatprep.mubr.f32.mxu0 0.0
  %v820 = vand.u32 %v513, 4294901760
  %v821 = vsub.f32 %v513, %v820
  %v822 = vand.u32 %v821, 4294901760
  %823 = vmatmul.mubr.f32.gmra.mrb[0].mxu0 %v822
  %v824 = vpop.f32.mrb[0].mxu0
  %v825 = vadd.f32 %v750, %v824
  %v826 = vpop.f32.mrb[0].mxu0
  %827 = vdwg.mxu0
  %828 = vmatprep.subr.mxu0 0.0
  %v829 = vand.u32 %v25, 4294901760
  %v830 = vsub.f32 %v25, %v829
  %v831 = vand.u32 %v830, 4294901760
  %832 = vmatpush1.msra.mxu0 %v831
  %833 = vmatprep.subr.mxu0 0.0
  %v834 = vand.u32 %v517, 4294901760
  %v835 = vsub.f32 %v517, %v834
  %v836 = vand.u32 %v835, 4294901760
  %837 = vmatpush1.msra.mxu0 %v836
  %838 = vmatprep.subr.mxu0 0.0
  %839 = vmatpush1.msra.mxu0 0.0
  %840 = vmatprep.subr.mxu0 0.0
  %841 = vmatpush1.msra.mxu0 0.0
  %842 = vmatprep.subr.mxu0 0.0
  %843 = vmatpush1.msra.mxu0 0.0
  %844 = vmatprep.subr.mxu0 0.0
  %845 = vmatpush1.msra.mxu0 0.0
  %846 = vmatprep.subr.mxu0 0.0
  %847 = vmatpush1.msra.mxu0 0.0
  %848 = vmatprep.subr.mxu0 0.0
  %849 = vmatpush1.msra.mxu0 0.0
  %850 = vmatprep.subr.mxu0 0.0
  %851 = vmatpush1.msra.mxu0 0.0
  %852 = vmatprep.subr.mxu0 0.0
  %853 = vmatpush1.msra.mxu0 0.0
  %854 = vmatprep.subr.mxu0 0.0
  %855 = vmatpush1.msra.mxu0 0.0
  %856 = vmatprep.subr.mxu0 0.0
  %857 = vmatpush1.msra.mxu0 0.0
  %858 = vmatprep.subr.mxu0 0.0
  %859 = vmatpush1.msra.mxu0 0.0
  %860 = vmatprep.subr.mxu0 0.0
  %861 = vmatpush1.msra.mxu0 0.0
  %862 = vmatprep.subr.mxu0 0.0
  %863 = vmatpush1.msra.mxu0 0.0
  %864 = vmatprep.subr.mxu0 0.0
  %865 = vmatpush1.msra.mxu0 0.0
  %866 = vmatprep.subr.mxu0 0.0
  %867 = vmatpush1.msra.mxu0 0.0
  %868 = vmatprep.subr.mxu0 0.0
  %869 = vmatpush1.msra.mxu0 0.0
  %870 = vmatprep.subr.mxu0 0.0
  %871 = vmatpush1.msra.mxu0 0.0
  %872 = vmatprep.subr.mxu0 0.0
  %873 = vmatpush1.msra.mxu0 0.0
  %874 = vmatprep.subr.mxu0 0.0
  %875 = vmatpush1.msra.mxu0 0.0
  %876 = vmatprep.subr.mxu0 0.0
  %877 = vmatpush1.msra.mxu0 0.0
  %878 = vmatprep.subr.mxu0 0.0
  %879 = vmatpush1.msra.mxu0 0.0
  %880 = vmatprep.subr.mxu0 0.0
  %881 = vmatpush1.msra.mxu0 0.0
  %882 = vmatprep.subr.mxu0 0.0
  %883 = vmatpush1.msra.mxu0 0.0
  %884 = vmatprep.subr.mxu0 0.0
  %885 = vmatpush1.msra.mxu0 0.0
  %886 = vmatprep.subr.mxu0 0.0
  %887 = vmatpush1.msra.mxu0 0.0
  %888 = vmatprep.subr.mxu0 0.0
  %889 = vmatpush1.msra.mxu0 0.0
  %890 = vmatprep.subr.mxu0 0.0
  %891 = vmatpush1.msra.mxu0 0.0
  %892 = vmatprep.subr.mxu0 0.0
  %893 = vmatpush1.msra.mxu0 0.0
  %894 = vmatprep.subr.mxu0 0.0
  %895 = vmatpush1.msra.mxu0 0.0
  %896 = vmatprep.subr.mxu0 0.0
  %897 = vmatpush1.msra.mxu0 0.0
  %898 = vmatprep.mubr.f32.mxu0 0.0
  %v899 = vand.u32 %v513, 4294901760
  %900 = vmatmul.mubr.f32.gmra.mrb[0].mxu0 %v899
  %v901 = vpop.f32.mrb[0].mxu0
  %v902 = vadd.f32 %v825, %v901
  %v903 = vpop.f32.mrb[0].mxu0
  %904 = vdwg.mxu0
  %905 = vmatprep.subr.mxu0 0.0
  %v906 = vand.u32 %v25, 4294901760
  %907 = vmatpush1.msra.mxu0 %v906
  %908 = vmatprep.subr.mxu0 0.0
  %v909 = vand.u32 %v517, 4294901760
  %910 = vmatpush1.msra.mxu0 %v909
  %911 = vmatprep.subr.mxu0 0.0
  %912 = vmatpush1.msra.mxu0 0.0
  %913 = vmatprep.subr.mxu0 0.0
  %914 = vmatpush1.msra.mxu0 0.0
  %915 = vmatprep.subr.mxu0 0.0
  %916 = vmatpush1.msra.mxu0 0.0
  %917 = vmatprep.subr.mxu0 0.0
  %918 = vmatpush1.msra.mxu0 0.0
  %919 = vmatprep.subr.mxu0 0.0
  %920 = vmatpush1.msra.mxu0 0.0
  %921 = vmatprep.subr.mxu0 0.0
  %922 = vmatpush1.msra.mxu0 0.0
  %923 = vmatprep.subr.mxu0 0.0
  %924 = vmatpush1.msra.mxu0 0.0
  %925 = vmatprep.subr.mxu0 0.0
  %926 = vmatpush1.msra.mxu0 0.0
  %927 = vmatprep.subr.mxu0 0.0
  %928 = vmatpush1.msra.mxu0 0.0
  %929 = vmatprep.subr.mxu0 0.0
  %930 = vmatpush1.msra.mxu0 0.0
  %931 = vmatprep.subr.mxu0 0.0
  %932 = vmatpush1.msra.mxu0 0.0
  %933 = vmatprep.subr.mxu0 0.0
  %934 = vmatpush1.msra.mxu0 0.0
  %935 = vmatprep.subr.mxu0 0.0
  %936 = vmatpush1.msra.mxu0 0.0
  %937 = vmatprep.subr.mxu0 0.0
  %938 = vmatpush1.msra.mxu0 0.0
  %939 = vmatprep.subr.mxu0 0.0
  %940 = vmatpush1.msra.mxu0 0.0
  %941 = vmatprep.subr.mxu0 0.0
  %942 = vmatpush1.msra.mxu0 0.0
  %943 = vmatprep.subr.mxu0 0.0
  %944 = vmatpush1.msra.mxu0 0.0
  %945 = vmatprep.subr.mxu0 0.0
  %946 = vmatpush1.msra.mxu0 0.0
  %947 = vmatprep.subr.mxu0 0.0
  %948 = vmatpush1.msra.mxu0 0.0
  %949 = vmatprep.subr.mxu0 0.0
  %950 = vmatpush1.msra.mxu0 0.0
  %951 = vmatprep.subr.mxu0 0.0
  %952 = vmatpush1.msra.mxu0 0.0
  %953 = vmatprep.subr.mxu0 0.0
  %954 = vmatpush1.msra.mxu0 0.0
  %955 = vmatprep.subr.mxu0 0.0
  %956 = vmatpush1.msra.mxu0 0.0
  %957 = vmatprep.subr.mxu0 0.0
  %958 = vmatpush1.msra.mxu0 0.0
  %959 = vmatprep.subr.mxu0 0.0
  %960 = vmatpush1.msra.mxu0 0.0
  %961 = vmatprep.subr.mxu0 0.0
  %962 = vmatpush1.msra.mxu0 0.0
  %963 = vmatprep.subr.mxu0 0.0
  %964 = vmatpush1.msra.mxu0 0.0
  %965 = vmatprep.subr.mxu0 0.0
  %966 = vmatpush1.msra.mxu0 0.0
  %967 = vmatprep.subr.mxu0 0.0
  %968 = vmatpush1.msra.mxu0 0.0
  %969 = vmatprep.subr.mxu0 0.0
  %970 = vmatpush1.msra.mxu0 0.0
  %971 = vmatprep.mubr.f32.mxu0 0.0
  %v972 = vand.u32 %v513, 4294901760
  %973 = vmatmul.mubr.f32.gmra.mrb[0].mxu0 %v972
  %v974 = vpop.f32.mrb[0].mxu0
  %v975 = vadd.f32 %v902, %v974
  %v976 = vpop.f32.mrb[0].mxu0
  %977 = vdwg.mxu0
  %978 = vset.pattern.permute.xlu0 0
  %979 = vperm.xlu0 %978, %v29
  %v980 = vpop.permute.xlu0 %979
  %vm981 = vcmp.eq.s32.totalorder %v31, %v980
  %v982 = vsel %vm981, 1, 0
  %v983 = vcvt.s32.f32 %v982
  %v985 = vsel %vm511, %v983, 0
  %987 = vmatprep.subr.mxu0 0.0
  %v988 = vand.u32 %v25, 4294901760
  %989 = vmatpush1.msra.mxu0 %v988
  %990 = vmatprep.subr.mxu0 0.0
  %v991 = vand.u32 %v517, 4294901760
  %992 = vmatpush1.msra.mxu0 %v991
  %993 = vmatprep.subr.mxu0 0.0
  %994 = vmatpush1.msra.mxu0 0.0
  %995 = vmatprep.subr.mxu0 0.0
  %996 = vmatpush1.msra.mxu0 0.0
  %997 = vmatprep.subr.mxu0 0.0
  %998 = vmatpush1.msra.mxu0 0.0
  %999 = vmatprep.subr.mxu0 0.0
  %1000 = vmatpush1.msra.mxu0 0.0
  %1001 = vmatprep.subr.mxu0 0.0
  %1002 = vmatpush1.msra.mxu0 0.0
  %1003 = vmatprep.subr.mxu0 0.0
  %1004 = vmatpush1.msra.mxu0 0.0
  %1005 = vmatprep.subr.mxu0 0.0
  %1006 = vmatpush1.msra.mxu0 0.0
  %1007 = vmatprep.subr.mxu0 0.0
  %1008 = vmatpush1.msra.mxu0 0.0
  %1009 = vmatprep.subr.mxu0 0.0
  %1010 = vmatpush1.msra.mxu0 0.0
  %1011 = vmatprep.subr.mxu0 0.0
  %1012 = vmatpush1.msra.mxu0 0.0
  %1013 = vmatprep.subr.mxu0 0.0
  %1014 = vmatpush1.msra.mxu0 0.0
  %1015 = vmatprep.subr.mxu0 0.0
  %1016 = vmatpush1.msra.mxu0 0.0
  %1017 = vmatprep.subr.mxu0 0.0
  %1018 = vmatpush1.msra.mxu0 0.0
  %1019 = vmatprep.subr.mxu0 0.0
  %1020 = vmatpush1.msra.mxu0 0.0
  %1021 = vmatprep.subr.mxu0 0.0
  %1022 = vmatpush1.msra.mxu0 0.0
  %1023 = vmatprep.subr.mxu0 0.0
  %1024 = vmatpush1.msra.mxu0 0.0
  %1025 = vmatprep.subr.mxu0 0.0
  %1026 = vmatpush1.msra.mxu0 0.0
  %1027 = vmatprep.subr.mxu0 0.0
  %1028 = vmatpush1.msra.mxu0 0.0
  %1029 = vmatprep.subr.mxu0 0.0
  %1030 = vmatpush1.msra.mxu0 0.0
  %1031 = vmatprep.subr.mxu0 0.0
  %1032 = vmatpush1.msra.mxu0 0.0
  %1033 = vmatprep.subr.mxu0 0.0
  %1034 = vmatpush1.msra.mxu0 0.0
  %1035 = vmatprep.subr.mxu0 0.0
  %1036 = vmatpush1.msra.mxu0 0.0
  %1037 = vmatprep.subr.mxu0 0.0
  %1038 = vmatpush1.msra.mxu0 0.0
  %1039 = vmatprep.subr.mxu0 0.0
  %1040 = vmatpush1.msra.mxu0 0.0
  %1041 = vmatprep.subr.mxu0 0.0
  %1042 = vmatpush1.msra.mxu0 0.0
  %1043 = vmatprep.subr.mxu0 0.0
  %1044 = vmatpush1.msra.mxu0 0.0
  %1045 = vmatprep.subr.mxu0 0.0
  %1046 = vmatpush1.msra.mxu0 0.0
  %1047 = vmatprep.subr.mxu0 0.0
  %1048 = vmatpush1.msra.mxu0 0.0
  %1049 = vmatprep.subr.mxu0 0.0
  %1050 = vmatpush1.msra.mxu0 0.0
  %1051 = vmatprep.subr.mxu0 0.0
  %1052 = vmatpush1.msra.mxu0 0.0
  %1053 = vmatprep.mubr.f32.mxu0 0.0
  %v1054 = vand.u32 %v985, 4294901760
  %v1055 = vsub.f32 %v985, %v1054
  %v1056 = vand.u32 %v1055, 4294901760
  %v1057 = vsub.f32 %v1055, %v1056
  %v1058 = vand.u32 %v1057, 4294901760
  %1059 = vmatmul.mubr.f32.gmra.mrb[0].mxu0 %v1058
  %v1060 = vpop.f32.mrb[0].mxu0
  %v1061 = vadd.f32 0.0, %v1060
  %v1062 = vpop.f32.mrb[0].mxu0
  %1063 = vdwg.mxu0
  %1064 = vmatprep.subr.mxu0 0.0
  %v1065 = vand.u32 %v25, 4294901760
  %v1066 = vsub.f32 %v25, %v1065
  %v1067 = vand.u32 %v1066, 4294901760
  %v1068 = vsub.f32 %v1066, %v1067
  %v1069 = vand.u32 %v1068, 4294901760
  %1070 = vmatpush1.msra.mxu0 %v1069
  %1071 = vmatprep.subr.mxu0 0.0
  %v1072 = vand.u32 %v517, 4294901760
  %v1073 = vsub.f32 %v517, %v1072
  %v1074 = vand.u32 %v1073, 4294901760
  %v1075 = vsub.f32 %v1073, %v1074
  %v1076 = vand.u32 %v1075, 4294901760
  %1077 = vmatpush1.msra.mxu0 %v1076
  %1078 = vmatprep.subr.mxu0 0.0
  %1079 = vmatpush1.msra.mxu0 0.0
  %1080 = vmatprep.subr.mxu0 0.0
  %1081 = vmatpush1.msra.mxu0 0.0
  %1082 = vmatprep.subr.mxu0 0.0
  %1083 = vmatpush1.msra.mxu0 0.0
  %1084 = vmatprep.subr.mxu0 0.0
  %1085 = vmatpush1.msra.mxu0 0.0
  %1086 = vmatprep.subr.mxu0 0.0
  %1087 = vmatpush1.msra.mxu0 0.0
  %1088 = vmatprep.subr.mxu0 0.0
  %1089 = vmatpush1.msra.mxu0 0.0
  %1090 = vmatprep.subr.mxu0 0.0
  %1091 = vmatpush1.msra.mxu0 0.0
  %1092 = vmatprep.subr.mxu0 0.0
  %1093 = vmatpush1.msra.mxu0 0.0
  %1094 = vmatprep.subr.mxu0 0.0
  %1095 = vmatpush1.msra.mxu0 0.0
  %1096 = vmatprep.subr.mxu0 0.0
  %1097 = vmatpush1.msra.mxu0 0.0
  %1098 = vmatprep.subr.mxu0 0.0
  %1099 = vmatpush1.msra.mxu0 0.0
  %1100 = vmatprep.subr.mxu0 0.0
  %1101 = vmatpush1.msra.mxu0 0.0
  %1102 = vmatprep.subr.mxu0 0.0
  %1103 = vmatpush1.msra.mxu0 0.0
  %1104 = vmatprep.subr.mxu0 0.0
  %1105 = vmatpush1.msra.mxu0 0.0
  %1106 = vmatprep.subr.mxu0 0.0
  %1107 = vmatpush1.msra.mxu0 0.0
  %1108 = vmatprep.subr.mxu0 0.0
  %1109 = vmatpush1.msra.mxu0 0.0
  %1110 = vmatprep.subr.mxu0 0.0
  %1111 = vmatpush1.msra.mxu0 0.0
  %1112 = vmatprep.subr.mxu0 0.0
  %1113 = vmatpush1.msra.mxu0 0.0
  %1114 = vmatprep.subr.mxu0 0.0
  %1115 = vmatpush1.msra.mxu0 0.0
  %1116 = vmatprep.subr.mxu0 0.0
  %1117 = vmatpush1.msra.mxu0 0.0
  %1118 = vmatprep.subr.mxu0 0.0
  %1119 = vmatpush1.msra.mxu0 0.0
  %1120 = vmatprep.subr.mxu0 0.0
  %1121 = vmatpush1.msra.mxu0 0.0
  %1122 = vmatprep.subr.mxu0 0.0
  %1123 = vmatpush1.msra.mxu0 0.0
  %1124 = vmatprep.subr.mxu0 0.0
  %1125 = vmatpush1.msra.mxu0 0.0
  %1126 = vmatprep.subr.mxu0 0.0
  %1127 = vmatpush1.msra.mxu0 0.0
  %1128 = vmatprep.subr.mxu0 0.0
  %1129 = vmatpush1.msra.mxu0 0.0
  %1130 = vmatprep.subr.mxu0 0.0
  %1131 = vmatpush1.msra.mxu0 0.0
  %1132 = vmatprep.subr.mxu0 0.0
  %1133 = vmatpush1.msra.mxu0 0.0
  %1134 = vmatprep.subr.mxu0 0.0
  %1135 = vmatpush1.msra.mxu0 0.0
  %1136 = vmatprep.subr.mxu0 0.0
  %1137 = vmatpush1.msra.mxu0 0.0
  %1138 = vmatprep.mubr.f32.mxu0 0.0
  %v1139 = vand.u32 %v985, 4294901760
  %1140 = vmatmul.mubr.f32.gmra.mrb[0].mxu0 %v1139
  %v1141 = vpop.f32.mrb[0].mxu0
  %v1142 = vadd.f32 %v1061, %v1141
  %v1143 = vpop.f32.mrb[0].mxu0
  %1144 = vdwg.mxu0
  %1145 = vmatprep.subr.mxu0 0.0
  %v1146 = vand.u32 %v25, 4294901760
  %v1147 = vsub.f32 %v25, %v1146
  %1148 = vmatpush1.msra.mxu0 %v1147
  %1149 = vmatprep.subr.mxu0 0.0
  %v1150 = vand.u32 %v517, 4294901760
  %v1151 = vsub.f32 %v517, %v1150
  %1152 = vmatpush1.msra.mxu0 %v1151
  %1153 = vmatprep.subr.mxu0 0.0
  %1154 = vmatpush1.msra.mxu0 0.0
  %1155 = vmatprep.subr.mxu0 0.0
  %1156 = vmatpush1.msra.mxu0 0.0
  %1157 = vmatprep.subr.mxu0 0.0
  %1158 = vmatpush1.msra.mxu0 0.0
  %1159 = vmatprep.subr.mxu0 0.0
  %1160 = vmatpush1.msra.mxu0 0.0
  %1161 = vmatprep.subr.mxu0 0.0
  %1162 = vmatpush1.msra.mxu0 0.0
  %1163 = vmatprep.subr.mxu0 0.0
  %1164 = vmatpush1.msra.mxu0 0.0
  %1165 = vmatprep.subr.mxu0 0.0
  %1166 = vmatpush1.msra.mxu0 0.0
  %1167 = vmatprep.subr.mxu0 0.0
  %1168 = vmatpush1.msra.mxu0 0.0
  %1169 = vmatprep.subr.mxu0 0.0
  %1170 = vmatpush1.msra.mxu0 0.0
  %1171 = vmatprep.subr.mxu0 0.0
  %1172 = vmatpush1.msra.mxu0 0.0
  %1173 = vmatprep.subr.mxu0 0.0
  %1174 = vmatpush1.msra.mxu0 0.0
  %1175 = vmatprep.subr.mxu0 0.0
  %1176 = vmatpush1.msra.mxu0 0.0
  %1177 = vmatprep.subr.mxu0 0.0
  %1178 = vmatpush1.msra.mxu0 0.0
  %1179 = vmatprep.subr.mxu0 0.0
  %1180 = vmatpush1.msra.mxu0 0.0
  %1181 = vmatprep.subr.mxu0 0.0
  %1182 = vmatpush1.msra.mxu0 0.0
  %1183 = vmatprep.subr.mxu0 0.0
  %1184 = vmatpush1.msra.mxu0 0.0
  %1185 = vmatprep.subr.mxu0 0.0
  %1186 = vmatpush1.msra.mxu0 0.0
  %1187 = vmatprep.subr.mxu0 0.0
  %1188 = vmatpush1.msra.mxu0 0.0
  %1189 = vmatprep.subr.mxu0 0.0
  %1190 = vmatpush1.msra.mxu0 0.0
  %1191 = vmatprep.subr.mxu0 0.0
  %1192 = vmatpush1.msra.mxu0 0.0
  %1193 = vmatprep.subr.mxu0 0.0
  %1194 = vmatpush1.msra.mxu0 0.0
  %1195 = vmatprep.subr.mxu0 0.0
  %1196 = vmatpush1.msra.mxu0 0.0
  %1197 = vmatprep.subr.mxu0 0.0
  %1198 = vmatpush1.msra.mxu0 0.0
  %1199 = vmatprep.subr.mxu0 0.0
  %1200 = vmatpush1.msra.mxu0 0.0
  %1201 = vmatprep.subr.mxu0 0.0
  %1202 = vmatpush1.msra.mxu0 0.0
  %1203 = vmatprep.subr.mxu0 0.0
  %1204 = vmatpush1.msra.mxu0 0.0
  %1205 = vmatprep.subr.mxu0 0.0
  %1206 = vmatpush1.msra.mxu0 0.0
  %1207 = vmatprep.subr.mxu0 0.0
  %1208 = vmatpush1.msra.mxu0 0.0
  %1209 = vmatprep.subr.mxu0 0.0
  %1210 = vmatpush1.msra.mxu0 0.0
  %1211 = vmatprep.subr.mxu0 0.0
  %1212 = vmatpush1.msra.mxu0 0.0
  %1213 = vmatprep.mubr.f32.mxu0 0.0
  %v1214 = vand.u32 %v985, 4294901760
  %v1215 = vsub.f32 %v985, %v1214
  %1216 = vmatmul.mubr.f32.gmra.mrb[0].mxu0 %v1215
  %v1217 = vpop.f32.mrb[0].mxu0
  %v1218 = vadd.f32 %v1142, %v1217
  %v1219 = vpop.f32.mrb[0].mxu0
  %1220 = vdwg.mxu0
  %1221 = vmatprep.subr.mxu0 0.0
  %v1222 = vand.u32 %v25, 4294901760
  %1223 = vmatpush1.msra.mxu0 %v1222
  %1224 = vmatprep.subr.mxu0 0.0
  %v1225 = vand.u32 %v517, 4294901760
  %1226 = vmatpush1.msra.mxu0 %v1225
  %1227 = vmatprep.subr.mxu0 0.0
  %1228 = vmatpush1.msra.mxu0 0.0
  %1229 = vmatprep.subr.mxu0 0.0
  %1230 = vmatpush1.msra.mxu0 0.0
  %1231 = vmatprep.subr.mxu0 0.0
  %1232 = vmatpush1.msra.mxu0 0.0
  %1233 = vmatprep.subr.mxu0 0.0
  %1234 = vmatpush1.msra.mxu0 0.0
  %1235 = vmatprep.subr.mxu0 0.0
  %1236 = vmatpush1.msra.mxu0 0.0
  %1237 = vmatprep.subr.mxu0 0.0
  %1238 = vmatpush1.msra.mxu0 0.0
  %1239 = vmatprep.subr.mxu0 0.0
  %1240 = vmatpush1.msra.mxu0 0.0
  %1241 = vmatprep.subr.mxu0 0.0
  %1242 = vmatpush1.msra.mxu0 0.0
  %1243 = vmatprep.subr.mxu0 0.0
  %1244 = vmatpush1.msra.mxu0 0.0
  %1245 = vmatprep.subr.mxu0 0.0
  %1246 = vmatpush1.msra.mxu0 0.0
  %1247 = vmatprep.subr.mxu0 0.0
  %1248 = vmatpush1.msra.mxu0 0.0
  %1249 = vmatprep.subr.mxu0 0.0
  %1250 = vmatpush1.msra.mxu0 0.0
  %1251 = vmatprep.subr.mxu0 0.0
  %1252 = vmatpush1.msra.mxu0 0.0
  %1253 = vmatprep.subr.mxu0 0.0
  %1254 = vmatpush1.msra.mxu0 0.0
  %1255 = vmatprep.subr.mxu0 0.0
  %1256 = vmatpush1.msra.mxu0 0.0
  %1257 = vmatprep.subr.mxu0 0.0
  %1258 = vmatpush1.msra.mxu0 0.0
  %1259 = vmatprep.subr.mxu0 0.0
  %1260 = vmatpush1.msra.mxu0 0.0
  %1261 = vmatprep.subr.mxu0 0.0
  %1262 = vmatpush1.msra.mxu0 0.0
  %1263 = vmatprep.subr.mxu0 0.0
  %1264 = vmatpush1.msra.mxu0 0.0
  %1265 = vmatprep.subr.mxu0 0.0
  %1266 = vmatpush1.msra.mxu0 0.0
  %1267 = vmatprep.subr.mxu0 0.0
  %1268 = vmatpush1.msra.mxu0 0.0
  %1269 = vmatprep.subr.mxu0 0.0
  %1270 = vmatpush1.msra.mxu0 0.0
  %1271 = vmatprep.subr.mxu0 0.0
  %1272 = vmatpush1.msra.mxu0 0.0
  %1273 = vmatprep.subr.mxu0 0.0
  %1274 = vmatpush1.msra.mxu0 0.0
  %1275 = vmatprep.subr.mxu0 0.0
  %1276 = vmatpush1.msra.mxu0 0.0
  %1277 = vmatprep.subr.mxu0 0.0
  %1278 = vmatpush1.msra.mxu0 0.0
  %1279 = vmatprep.subr.mxu0 0.0
  %1280 = vmatpush1.msra.mxu0 0.0
  %1281 = vmatprep.subr.mxu0 0.0
  %1282 = vmatpush1.msra.mxu0 0.0
  %1283 = vmatprep.subr.mxu0 0.0
  %1284 = vmatpush1.msra.mxu0 0.0
  %1285 = vmatprep.subr.mxu0 0.0
  %1286 = vmatpush1.msra.mxu0 0.0
  %1287 = vmatprep.mubr.f32.mxu0 0.0
  %v1288 = vand.u32 %v985, 4294901760
  %v1289 = vsub.f32 %v985, %v1288
  %v1290 = vand.u32 %v1289, 4294901760
  %1291 = vmatmul.mubr.f32.gmra.mrb[0].mxu0 %v1290
  %v1292 = vpop.f32.mrb[0].mxu0
  %v1293 = vadd.f32 %v1218, %v1292
  %v1294 = vpop.f32.mrb[0].mxu0
  %1295 = vdwg.mxu0
  %1296 = vmatprep.subr.mxu0 0.0
  %v1297 = vand.u32 %v25, 4294901760
  %v1298 = vsub.f32 %v25, %v1297
  %v1299 = vand.u32 %v1298, 4294901760
  %1300 = vmatpush1.msra.mxu0 %v1299
  %1301 = vmatprep.subr.mxu0 0.0
  %v1302 = vand.u32 %v517, 4294901760
  %v1303 = vsub.f32 %v517, %v1302
  %v1304 = vand.u32 %v1303, 4294901760
  %1305 = vmatpush1.msra.mxu0 %v1304
  %1306 = vmatprep.subr.mxu0 0.0
  %1307 = vmatpush1.msra.mxu0 0.0
  %1308 = vmatprep.subr.mxu0 0.0
  %1309 = vmatpush1.msra.mxu0 0.0
  %1310 = vmatprep.subr.mxu0 0.0
  %1311 = vmatpush1.msra.mxu0 0.0
  %1312 = vmatprep.subr.mxu0 0.0
  %1313 = vmatpush1.msra.mxu0 0.0
  %1314 = vmatprep.subr.mxu0 0.0
  %1315 = vmatpush1.msra.mxu0 0.0
  %1316 = vmatprep.subr.mxu0 0.0
  %1317 = vmatpush1.msra.mxu0 0.0
  %1318 = vmatprep.subr.mxu0 0.0
  %1319 = vmatpush1.msra.mxu0 0.0
  %1320 = vmatprep.subr.mxu0 0.0
  %1321 = vmatpush1.msra.mxu0 0.0
  %1322 = vmatprep.subr.mxu0 0.0
  %1323 = vmatpush1.msra.mxu0 0.0
  %1324 = vmatprep.subr.mxu0 0.0
  %1325 = vmatpush1.msra.mxu0 0.0
  %1326 = vmatprep.subr.mxu0 0.0
  %1327 = vmatpush1.msra.mxu0 0.0
  %1328 = vmatprep.subr.mxu0 0.0
  %1329 = vmatpush1.msra.mxu0 0.0
  %1330 = vmatprep.subr.mxu0 0.0
  %1331 = vmatpush1.msra.mxu0 0.0
  %1332 = vmatprep.subr.mxu0 0.0
  %1333 = vmatpush1.msra.mxu0 0.0
  %1334 = vmatprep.subr.mxu0 0.0
  %1335 = vmatpush1.msra.mxu0 0.0
  %1336 = vmatprep.subr.mxu0 0.0
  %1337 = vmatpush1.msra.mxu0 0.0
  %1338 = vmatprep.subr.mxu0 0.0
  %1339 = vmatpush1.msra.mxu0 0.0
  %1340 = vmatprep.subr.mxu0 0.0
  %1341 = vmatpush1.msra.mxu0 0.0
  %1342 = vmatprep.subr.mxu0 0.0
  %1343 = vmatpush1.msra.mxu0 0.0
  %1344 = vmatprep.subr.mxu0 0.0
  %1345 = vmatpush1.msra.mxu0 0.0
  %1346 = vmatprep.subr.mxu0 0.0
  %1347 = vmatpush1.msra.mxu0 0.0
  %1348 = vmatprep.subr.mxu0 0.0
  %1349 = vmatpush1.msra.mxu0 0.0
  %1350 = vmatprep.subr.mxu0 0.0
  %1351 = vmatpush1.msra.mxu0 0.0
  %1352 = vmatprep.subr.mxu0 0.0
  %1353 = vmatpush1.msra.mxu0 0.0
  %1354 = vmatprep.subr.mxu0 0.0
  %1355 = vmatpush1.msra.mxu0 0.0
  %1356 = vmatprep.subr.mxu0 0.0
  %1357 = vmatpush1.msra.mxu0 0.0
  %1358 = vmatprep.subr.mxu0 0.0
  %1359 = vmatpush1.msra.mxu0 0.0
  %1360 = vmatprep.subr.mxu0 0.0
  %1361 = vmatpush1.msra.mxu0 0.0
  %1362 = vmatprep.subr.mxu0 0.0
  %1363 = vmatpush1.msra.mxu0 0.0
  %1364 = vmatprep.subr.mxu0 0.0
  %1365 = vmatpush1.msra.mxu0 0.0
  %1366 = vmatprep.mubr.f32.mxu0 0.0
  %v1367 = vand.u32 %v985, 4294901760
  %1368 = vmatmul.mubr.f32.gmra.mrb[0].mxu0 %v1367
  %v1369 = vpop.f32.mrb[0].mxu0
  %v1370 = vadd.f32 %v1293, %v1369
  %v1371 = vpop.f32.mrb[0].mxu0
  %1372 = vdwg.mxu0
  %1373 = vmatprep.subr.mxu0 0.0
  %v1374 = vand.u32 %v25, 4294901760
  %1375 = vmatpush1.msra.mxu0 %v1374
  %1376 = vmatprep.subr.mxu0 0.0
  %v1377 = vand.u32 %v517, 4294901760
  %1378 = vmatpush1.msra.mxu0 %v1377
  %1379 = vmatprep.subr.mxu0 0.0
  %1380 = vmatpush1.msra.mxu0 0.0
  %1381 = vmatprep.subr.mxu0 0.0
  %1382 = vmatpush1.msra.mxu0 0.0
  %1383 = vmatprep.subr.mxu0 0.0
  %1384 = vmatpush1.msra.mxu0 0.0
  %1385 = vmatprep.subr.mxu0 0.0
  %1386 = vmatpush1.msra.mxu0 0.0
  %1387 = vmatprep.subr.mxu0 0.0
  %1388 = vmatpush1.msra.mxu0 0.0
  %1389 = vmatprep.subr.mxu0 0.0
  %1390 = vmatpush1.msra.mxu0 0.0
  %1391 = vmatprep.subr.mxu0 0.0
  %1392 = vmatpush1.msra.mxu0 0.0
  %1393 = vmatprep.subr.mxu0 0.0
  %1394 = vmatpush1.msra.mxu0 0.0
  %1395 = vmatprep.subr.mxu0 0.0
  %1396 = vmatpush1.msra.mxu0 0.0
  %1397 = vmatprep.subr.mxu0 0.0
  %1398 = vmatpush1.msra.mxu0 0.0
  %1399 = vmatprep.subr.mxu0 0.0
  %1400 = vmatpush1.msra.mxu0 0.0
  %1401 = vmatprep.subr.mxu0 0.0
  %1402 = vmatpush1.msra.mxu0 0.0
  %1403 = vmatprep.subr.mxu0 0.0
  %1404 = vmatpush1.msra.mxu0 0.0
  %1405 = vmatprep.subr.mxu0 0.0
  %1406 = vmatpush1.msra.mxu0 0.0
  %1407 = vmatprep.subr.mxu0 0.0
  %1408 = vmatpush1.msra.mxu0 0.0
  %1409 = vmatprep.subr.mxu0 0.0
  %1410 = vmatpush1.msra.mxu0 0.0
  %1411 = vmatprep.subr.mxu0 0.0
  %1412 = vmatpush1.msra.mxu0 0.0
  %1413 = vmatprep.subr.mxu0 0.0
  %1414 = vmatpush1.msra.mxu0 0.0
  %1415 = vmatprep.subr.mxu0 0.0
  %1416 = vmatpush1.msra.mxu0 0.0
  %1417 = vmatprep.subr.mxu0 0.0
  %1418 = vmatpush1.msra.mxu0 0.0
  %1419 = vmatprep.subr.mxu0 0.0
  %1420 = vmatpush1.msra.mxu0 0.0
  %1421 = vmatprep.subr.mxu0 0.0
  %1422 = vmatpush1.msra.mxu0 0.0
  %1423 = vmatprep.subr.mxu0 0.0
  %1424 = vmatpush1.msra.mxu0 0.0
  %1425 = vmatprep.subr.mxu0 0.0
  %1426 = vmatpush1.msra.mxu0 0.0
  %1427 = vmatprep.subr.mxu0 0.0
  %1428 = vmatpush1.msra.mxu0 0.0
  %1429 = vmatprep.subr.mxu0 0.0
  %1430 = vmatpush1.msra.mxu0 0.0
  %1431 = vmatprep.subr.mxu0 0.0
  %1432 = vmatpush1.msra.mxu0 0.0
  %1433 = vmatprep.subr.mxu0 0.0
  %1434 = vmatpush1.msra.mxu0 0.0
  %1435 = vmatprep.subr.mxu0 0.0
  %1436 = vmatpush1.msra.mxu0 0.0
  %1437 = vmatprep.subr.mxu0 0.0
  %1438 = vmatpush1.msra.mxu0 0.0
  %1439 = vmatprep.mubr.f32.mxu0 0.0
  %v1440 = vand.u32 %v985, 4294901760
  %1441 = vmatmul.mubr.f32.gmra.mrb[0].mxu0 %v1440
  %v1442 = vpop.f32.mrb[0].mxu0
  %v1443 = vadd.f32 %v1370, %v1442
  %v1444 = vpop.f32.mrb[0].mxu0
  %1445 = vdwg.mxu0
  %v1446 = vsub.f32 %v975, %v1443
  %v1447 = vmul.f32 %v502, %v1446
  %vm1448 = vcmask 261120
  %v1449 = vsel %vm1448, %v1447, 0.0
  %1450 = vadd.xlane.f32.xlu0 %v1449
  %v1451 = vpop.xlane.xlu0 %1450
  %v1452 = vmin.f32 %v1451, 0.0
  %v1453 = vand.u32 2147483647, %v1451
  %v1454 = vsub.f32 0.0, %v1453
  %v1455 = vmul.f32 %v1454, 1.442695
  %v1456 = vpow.pop %v1455
  %v1457 = vadd.f32 %v1456, 1.0
  %v1458 = vlog2.pop %v1457
  %v1459 = vmul.f32 %v1458, 0.6931472
  %v1460 = vmul.f32 -0.5, %v1456
  %v1461 = vadd.f32 %v1460, 1.0
  %v1462 = vmul.f32 %v1461, %v1456
  %v1463 = vand.u32 2147483647, %v1456
  %vm1464 = vcmp.lt.f32.partialorder %v1463, 0.0004427343
  %v1465 = vsel %vm1464, %v1462, %v1459
  %v1466 = vsub.f32 %v1452, %v1465
  %v1467 = vmul.f32 %v502, %v502
  %v1468 = vsel %vm1448, %v1467, 0.0
  %1469 = vadd.xlane.f32.xlu0 %v1468
  %v1470 = vpop.xlane.xlu0 %1469
  %v1471 = vrsqrt.pop %v1470
  %v1472 = vmul.f32 %v1470, %v1471
  %vm1473 = vcmp.eq.f32.partialorder %v1470, inf
  %v1474 = vsel %vm1473, %v1470, %v1472
  %vm1475 = vcmp.eq.f32.partialorder %v1470, 0.0
  %v1476 = vand.u32 %v1470, 2147483648
  %v1477 = vsel %vm1475, %v1476, %v1474
  %v1478 = vmul.f32 %v975, %v975
  %v1479 = vsel %vm1448, %v1478, 0.0
  %1480 = vadd.xlane.f32.xlu0 %v1479
  %v1481 = vpop.xlane.xlu0 %1480
  %v1482 = vrsqrt.pop %v1481
  %v1483 = vmul.f32 %v1481, %v1482
  %vm1484 = vcmp.eq.f32.partialorder %v1481, inf
  %v1485 = vsel %vm1484, %v1481, %v1483
  %vm1486 = vcmp.eq.f32.partialorder %v1481, 0.0
  %v1487 = vand.u32 %v1481, 2147483648
  %v1488 = vsel %vm1486, %v1487, %v1485
  %v1489 = vmul.f32 %v1443, %v1443
  %v1490 = vsel %vm1448, %v1489, 0.0
  %1491 = vadd.xlane.f32.xlu0 %v1490
  %v1492 = vpop.xlane.xlu0 %1491
  %v1493 = vrsqrt.pop %v1492
  %v1494 = vmul.f32 %v1492, %v1493
  %vm1495 = vcmp.eq.f32.partialorder %v1492, inf
  %v1496 = vsel %vm1495, %v1492, %v1494
  %vm1497 = vcmp.eq.f32.partialorder %v1492, 0.0
  %v1498 = vand.u32 %v1492, 2147483648
  %v1499 = vsel %vm1497, %v1498, %v1496
  %v1500 = vadd.f32 %v1477, %v1488
  %v1501 = vadd.f32 %v1500, %v1499
  %v1502 = vstv %s22
  %v1503 = vmul.f32 %v1502, %v1501
  %v1504 = vsub.f32 0.0, %v1466
  %v1505 = vadd.f32 %v1504, %v1503
  %vm1506 = vcmask 7168
  %1507 = vst.msk [vmem:[%s6] sm:$0xff] %vm1506, %v1505
  // Predicated region
  $region22: #{tpu_custom_call.1} parent=0 // pred_check
    _
  $region23: #{tpu_custom_call.1} parent=0 // pred_check_branch
    %1509 = sbr.rel (0) target = $region25
  $region24: #{tpu_custom_call.1} parent=0 // pred_region
    _
  $region25: #{tpu_custom_call.1} parent=0 // pred_fallthru
    _
  // Predicated region
  $region26: #{tpu_custom_call.1} parent=0 // pred_check
    _
  $region27: #{tpu_custom_call.1} parent=0 // pred_check_branch
    %1511 = sbr.rel (0) target = $region29
  $region28: #{tpu_custom_call.1} parent=0 // pred_region
    _
  $region29: #{tpu_custom_call.1} parent=0 // pred_fallthru
    _

</llo_original>
